<compile_context>
chip_gen: v5e
topology: v5e:2x2
jax: 0.10.0
libtpu: 0.0.40
codegen_flags: <defaults>
</compile_context>

<pallas_src>
import numpy as np
import jax
import jax.numpy as jnp
from jax.experimental import pallas as pl
from jax.experimental.pallas import tpu as pltpu

# tap order shared by mask construction, weight packing and the kernel
_TAPS = tuple((dy, dx) for dy in (-1, 0, 1) for dx in (-1, 0, 1))


# ----------------------------------------------------------------------------
# Fused Inception kernel (one batch item per grid step)
# ----------------------------------------------------------------------------
def make_inception_kernel(H, W, n1x1, n3x3red, n3x3, n5x5red, n5x5, pool_ch):
    HW = H * W
    c1 = n1x1 + n3x3red + n5x5red        # width of the fused 1x1 stage
    c_m = n3x3 + n5x5                    # width of the merged 3x3 stage
    o_m = c1                             # offsets into the packed scale/shift
    o_32 = o_m + c_m
    o_4 = o_32 + n5x5

    def kernel(x_ref, mask_ref, w1_ref, wm_ref, w32_ref, w4_ref,
               scale_ref, shift_ref, o_ref):
        x = x_ref[...]                   # (Cin, HW)  f32
        bn_scale = scale_ref[...]        # (C_aff, 1) folded BN scale (packed)
        bn_shift = shift_ref[...]        # (C_aff, 1) folded BN shift (packed)
        mks = [mask_ref[k] for k in range(9)]   # 9 x (1, HW) border-validity masks

        def tap(t, k):
            # out[:, p] = t[:, p + dy*W + dx]; wrapped entries get masked out.
            dy, dx = _TAPS[k]
            off = dy * W + dx
            if off == 0:
                return t
            return pltpu.roll(t, shift=(-off) % HW, axis=1)

        def conv3x3(t, w_mat, s, b):
            # im2col: one MXU matmul of contraction depth 9*Ct (not 9 tiny dots)
            patches = [tap(t, k) * mks[k] for k in range(9)]
            pm = jnp.concatenate(patches, axis=0)             # (9*Ct, HW)
            acc = jnp.dot(w_mat, pm, preferred_element_type=jnp.float32)
            return jnp.maximum(acc * s + b, 0.0)

        # -- branches 1-3, stage 1: all three 1x1 convs over x in one matmul --
        acc1 = jnp.dot(w1_ref[...], x, preferred_element_type=jnp.float32)
        g1 = jnp.maximum(acc1 * bn_scale[0:c1] + bn_shift[0:c1], 0.0)
        y1 = g1[0:n1x1]                  # branch-1 output
        t23 = g1[n1x1:c1]                # [b2-reduce ; b3-reduce] channel-stacked

        # -- branches 2+3, stage 2: merged 3x3 (block-diagonal weights) --
        z = conv3x3(t23, wm_ref[...],
                    bn_scale[o_m:o_m + c_m], bn_shift[o_m:o_m + c_m])
        y2 = z[0:n3x3]                   # branch-2 output
        u = z[n3x3:c_m]                  # branch-3 intermediate

        # -- branch 3, stage 3: second 3x3 --
        y3 = conv3x3(u, w32_ref[...],
                     bn_scale[o_32:o_32 + n5x5], bn_shift[o_32:o_32 + n5x5])

        # -- branch 4: 3x3 / stride-1 / pad-1 max pool, then 1x1 conv --
        neg = jnp.float32(-3.0e38)
        m = x                            # center tap is always valid
        for k in range(9):
            if _TAPS[k] == (0, 0):
                continue
            m = jnp.maximum(m, jnp.where(mks[k] > 0.5, tap(x, k), neg))
        acc4 = jnp.dot(w4_ref[...], m, preferred_element_type=jnp.float32)
        y4 = jnp.maximum(acc4 * bn_scale[o_4:o_4 + pool_ch]
                         + bn_shift[o_4:o_4 + pool_ch], 0.0)

        # channel-concatenated output slab, already in NCHW order
        o_ref[...] = jnp.concatenate([y1, y2, y3, y4], axis=0)

    return kernel


# ----------------------------------------------------------------------------
# Weight / mask packing helpers (XLA wrapper side, runs once)
# ----------------------------------------------------------------------------
def _pack_1x1(ws):
    # list of (1,1,Ci,Co) HWIO kernels -> (sum Co, Ci); conv becomes y = W @ x_flat
    mats = [jnp.transpose(w.reshape(w.shape[2], w.shape[3])) for w in ws]
    return jnp.concatenate(mats, axis=0)


def _pack_3x3(w):
    # (3,3,Ci,Co) HWIO -> (Co, 9*Ci), tap-major (ky,kx) then ci (matches im2col order)
    return jnp.transpose(w, (3, 0, 1, 2)).reshape(w.shape[3], -1)


def _merge_3x3(w_a, w_b):
    # Two parallel 3x3 convs on a channel-stacked input -> one block-diagonal matmul.
    ca, coa = w_a.shape[2], w_a.shape[3]
    cb, cob = w_b.shape[2], w_b.shape[3]
    w = jnp.zeros((3, 3, ca + cb, coa + cob), jnp.float32)
    w = w.at[:, :, :ca, :coa].set(w_a)
    w = w.at[:, :, ca:, coa:].set(w_b)
    return _pack_3x3(w)


def _tap_masks(H, W):
    # (9, 1, H*W) f32: 1.0 where the shifted tap stays inside the image, else 0.0
    m = np.zeros((9, 1, H * W), np.float32)
    yy, xx = np.meshgrid(np.arange(H), np.arange(W), indexing="ij")
    for k, (dy, dx) in enumerate(_TAPS):
        valid = (yy + dy >= 0) & (yy + dy < H) & (xx + dx >= 0) & (xx + dx < W)
        m[k, 0] = valid.reshape(-1).astype(np.float32)
    return jnp.asarray(m)


# ----------------------------------------------------------------------------
# Inception forward (NCHW in, NCHW out; single pallas_call)
# ----------------------------------------------------------------------------
def inception_forward(x_nchw, params, dims):
    n1x1, n3x3red, n3x3, n5x5red, n5x5, pool_ch = dims
    N, Cin, H, W = x_nchw.shape
    HW = H * W
    c_out = n1x1 + n3x3 + n5x5 + pool_ch
    c1 = n1x1 + n3x3red + n5x5red
    c_aff = c1 + n3x3 + 2 * n5x5 + pool_ch

    w_b1, s_b1, b_b1 = params["b1_0"]
    w_b20, s_b20, b_b20 = params["b2_0"]
    w_b21, s_b21, b_b21 = params["b2_1"]
    w_b30, s_b30, b_b30 = params["b3_0"]
    w_b31, s_b31, b_b31 = params["b3_1"]
    w_b32, s_b32, b_b32 = params["b3_2"]
    w_b40, s_b40, b_b40 = params["b4_0"]

    x_flat = x_nchw.reshape(N, Cin, HW).astype(jnp.float32)   # (Cin, H*W) is NCHW flattened
    masks = _tap_masks(H, W)
    w1 = _pack_1x1([w_b1, w_b20, w_b30])        # (c1, Cin)        fused 1x1 stage
    wm = _merge_3x3(w_b21, w_b31)               # (n3x3+n5x5, 9*(n3x3red+n5x5red))
    w32 = _pack_3x3(w_b32)                      # (n5x5, 9*n5x5)
    w4 = _pack_1x1([w_b40])                     # (pool_ch, Cin)
    scale = jnp.concatenate(
        [s_b1, s_b20, s_b30, s_b21, s_b31, s_b32, s_b40]).reshape(c_aff, 1)
    shift = jnp.concatenate(
        [b_b1, b_b20, b_b30, b_b21, b_b31, b_b32, b_b40]).reshape(c_aff, 1)

    kernel = make_inception_kernel(H, W, n1x1, n3x3red, n3x3, n5x5red, n5x5, pool_ch)

    out = pl.pallas_call(
        kernel,
        out_shape=jax.ShapeDtypeStruct((N, c_out, HW), jnp.float32),
        grid=(N,),
        in_specs=[
            pl.BlockSpec((None, Cin, HW), lambda n: (n, 0, 0)),     # x (one image)
            pl.BlockSpec((9, 1, HW), lambda n: (0, 0, 0)),          # tap masks
            pl.BlockSpec((c1, Cin), lambda n: (0, 0)),              # fused 1x1 weights
            pl.BlockSpec(wm.shape, lambda n: (0, 0)),               # merged 3x3 weights
            pl.BlockSpec(w32.shape, lambda n: (0, 0)),              # branch-3 second 3x3
            pl.BlockSpec((pool_ch, Cin), lambda n: (0, 0)),         # pool-branch 1x1
            pl.BlockSpec((c_aff, 1), lambda n: (0, 0)),             # packed BN scale
            pl.BlockSpec((c_aff, 1), lambda n: (0, 0)),             # packed BN shift
        ],
        out_specs=pl.BlockSpec((None, c_out, HW), lambda n: (n, 0, 0)),
        compiler_params=pltpu.CompilerParams(dimension_semantics=("parallel",)),
    )(x_flat, masks, w1, wm, w32, w4, scale, shift)

    return out.reshape(N, c_out, H, W)                              # free reshape, already NCHW


# ----------------------------------------------------------------------------
# Parameter construction (deterministic, synthetic; BN folded to scale/shift)
# ----------------------------------------------------------------------------
def make_conv_bn(key, cin, cout, k, eps=1e-5):
    kw, kb = jax.random.split(key)
    fan_in = cin * k * k
    w = jax.random.normal(kw, (k, k, cin, cout), jnp.float32) / (fan_in ** 0.5)
    b = 0.1 * jax.random.normal(kb, (cout,), jnp.float32)
    i = jnp.arange(cout, dtype=jnp.float32)
    gamma = 1.0 + 0.1 * i
    beta = 0.05 * i
    running_mean = 0.01 * i
    running_var = 1.0 + 0.02 * i
    scale = gamma / jnp.sqrt(running_var + eps)
    shift = beta + (b - running_mean) * scale    # conv bias folded into shift
    return w, scale, shift


# ----------------------------------------------------------------------------
# Pure-JAX reference (for the correctness assertion)
# ----------------------------------------------------------------------------
def _ref_conv_bn_relu(x, w, scale, shift, pad):
    y = jax.lax.conv_general_dilated(
        x, w, window_strides=(1, 1), padding=[(pad, pad), (pad, pad)],
        dimension_numbers=("NHWC", "HWIO", "NHWC"))
    return jnp.maximum(y * scale + shift, 0.0)


def _ref_maxpool(x):
    return jax.lax.reduce_window(
        x, -jnp.inf, jax.lax.max, (1, 3, 3, 1), (1, 1, 1, 1),
        [(0, 0), (1, 1), (1, 1), (0, 0)])


def _ref_forward(x_nchw, params):
    x = jnp.transpose(x_nchw, (0, 2, 3, 1))
    w, s, sh = params["b1_0"]; y1 = _ref_conv_bn_relu(x, w, s, sh, 0)
    w, s, sh = params["b2_0"]; t = _ref_conv_bn_relu(x, w, s, sh, 0)
    w, s, sh = params["b2_1"]; y2 = _ref_conv_bn_relu(t, w, s, sh, 1)
    w, s, sh = params["b3_0"]; t = _ref_conv_bn_relu(x, w, s, sh, 0)
    w, s, sh = params["b3_1"]; t = _ref_conv_bn_relu(t, w, s, sh, 1)
    w, s, sh = params["b3_2"]; y3 = _ref_conv_bn_relu(t, w, s, sh, 1)
    p = _ref_maxpool(x)
    w, s, sh = params["b4_0"]; y4 = _ref_conv_bn_relu(p, w, s, sh, 0)
    return jnp.transpose(jnp.concatenate([y1, y2, y3, y4], -1), (0, 3, 1, 2))


if __name__ == "__main__":
    # Inception(in_channels=4, n1x1=8, n3x3red=4, n3x3=8, n5x5red=4, n5x5=8, pool_channels=8)
    in_channels, n1x1, n3x3red, n3x3, n5x5red, n5x5, pool_channels = 4, 8, 4, 8, 4, 8, 8
    N, H, W = 2, 16, 16

    keys = jax.random.split(jax.random.PRNGKey(0), 8)
    x = jax.random.normal(keys[0], (N, in_channels, H, W), jnp.float32)

    params = {
        "b1_0": make_conv_bn(keys[1], in_channels, n1x1, 1),
        "b2_0": make_conv_bn(keys[2], in_channels, n3x3red, 1),
        "b2_1": make_conv_bn(keys[3], n3x3red, n3x3, 3),
        "b3_0": make_conv_bn(keys[4], in_channels, n5x5red, 1),
        "b3_1": make_conv_bn(keys[5], n5x5red, n5x5, 3),
        "b3_2": make_conv_bn(keys[6], n5x5, n5x5, 3),
        "b4_0": make_conv_bn(keys[7], in_channels, pool_channels, 1),
    }
    dims = (n1x1, n3x3red, n3x3, n5x5red, n5x5, pool_channels)

    out = jax.block_until_ready(inception_forward(x, params, dims))

    expected_channels = n1x1 + n3x3 + n5x5 + pool_channels
    assert out.shape == (N, expected_channels, H, W), out.shape

    ref = jax.block_until_ready(_ref_forward(x, params))
    assert jnp.allclose(out, ref, atol=2e-4, rtol=2e-4), float(jnp.max(jnp.abs(out - ref)))

    print("KERNEL_OK")
</pallas_src>

<mosaic_0001>
module attributes {stable_mosaic.version = 11 : i64} {
  func.func @kernel(%arg0: i32, %arg1: memref<1x4x256xf32, #tpu.memory_space<vmem>>, %arg2: memref<9x1x256xf32, #tpu.memory_space<vmem>>, %arg3: memref<16x4xf32, #tpu.memory_space<vmem>>, %arg4: memref<16x72xf32, #tpu.memory_space<vmem>>, %arg5: memref<8x72xf32, #tpu.memory_space<vmem>>, %arg6: memref<8x4xf32, #tpu.memory_space<vmem>>, %arg7: memref<48x1xf32, #tpu.memory_space<vmem>>, %arg8: memref<48x1xf32, #tpu.memory_space<vmem>>, %arg9: memref<1x32x256xf32, #tpu.memory_space<vmem>>) attributes {dimension_semantics = [#tpu.dimension_semantics<parallel>], iteration_bounds = array<i64: 2>, scalar_prefetch = 0 : i64, scratch_operands = 0 : i64, tpu.core_type = #tpu.core_type<tc>, window_params = [{transform_indices = @transform_0, window_bounds = array<i64: 1, 4, 256>}, {pipeline_mode = #tpu.pipeline_mode<synchronous>, transform_indices = @transform_1, window_bounds = array<i64: 9, 1, 256>}, {pipeline_mode = #tpu.pipeline_mode<synchronous>, transform_indices = @transform_2, window_bounds = array<i64: 16, 4>}, {pipeline_mode = #tpu.pipeline_mode<synchronous>, transform_indices = @transform_3, window_bounds = array<i64: 16, 72>}, {pipeline_mode = #tpu.pipeline_mode<synchronous>, transform_indices = @transform_4, window_bounds = array<i64: 8, 72>}, {pipeline_mode = #tpu.pipeline_mode<synchronous>, transform_indices = @transform_5, window_bounds = array<i64: 8, 4>}, {pipeline_mode = #tpu.pipeline_mode<synchronous>, transform_indices = @transform_6, window_bounds = array<i64: 48, 1>}, {pipeline_mode = #tpu.pipeline_mode<synchronous>, transform_indices = @transform_7, window_bounds = array<i64: 48, 1>}, {transform_indices = @transform_8, window_bounds = array<i64: 1, 32, 256>}]} {
    %c0 = arith.constant 0 : index
    %c0_0 = arith.constant 0 : index
    %c0_1 = arith.constant 0 : index
    %0 = vector.load %arg1[%c0, %c0_0, %c0_1] : memref<1x4x256xf32, #tpu.memory_space<vmem>>, vector<1x4x256xf32>
    %1 = vector.shape_cast %0 : vector<1x4x256xf32> to vector<4x256xf32>
    %c0_2 = arith.constant 0 : index
    %c0_3 = arith.constant 0 : index
    %2 = vector.load %arg7[%c0_2, %c0_3] : memref<48x1xf32, #tpu.memory_space<vmem>>, vector<48x1xf32>
    %c0_4 = arith.constant 0 : index
    %c0_5 = arith.constant 0 : index
    %3 = vector.load %arg8[%c0_4, %c0_5] : memref<48x1xf32, #tpu.memory_space<vmem>>, vector<48x1xf32>
    %c0_6 = arith.constant 0 : index
    %c0_7 = arith.constant 0 : index
    %c0_8 = arith.constant 0 : index
    %4 = vector.load %arg2[%c0_6, %c0_7, %c0_8] : memref<9x1x256xf32, #tpu.memory_space<vmem>>, vector<1x1x256xf32>
    %5 = vector.shape_cast %4 : vector<1x1x256xf32> to vector<1x256xf32>
    %c1 = arith.constant 1 : index
    %c0_9 = arith.constant 0 : index
    %c0_10 = arith.constant 0 : index
    %6 = vector.load %arg2[%c1, %c0_9, %c0_10] : memref<9x1x256xf32, #tpu.memory_space<vmem>>, vector<1x1x256xf32>
    %7 = vector.shape_cast %6 : vector<1x1x256xf32> to vector<1x256xf32>
    %c2 = arith.constant 2 : index
    %c0_11 = arith.constant 0 : index
    %c0_12 = arith.constant 0 : index
    %8 = vector.load %arg2[%c2, %c0_11, %c0_12] : memref<9x1x256xf32, #tpu.memory_space<vmem>>, vector<1x1x256xf32>
    %9 = vector.shape_cast %8 : vector<1x1x256xf32> to vector<1x256xf32>
    %c3 = arith.constant 3 : index
    %c0_13 = arith.constant 0 : index
    %c0_14 = arith.constant 0 : index
    %10 = vector.load %arg2[%c3, %c0_13, %c0_14] : memref<9x1x256xf32, #tpu.memory_space<vmem>>, vector<1x1x256xf32>
    %11 = vector.shape_cast %10 : vector<1x1x256xf32> to vector<1x256xf32>
    %c4 = arith.constant 4 : index
    %c0_15 = arith.constant 0 : index
    %c0_16 = arith.constant 0 : index
    %12 = vector.load %arg2[%c4, %c0_15, %c0_16] : memref<9x1x256xf32, #tpu.memory_space<vmem>>, vector<1x1x256xf32>
    %13 = vector.shape_cast %12 : vector<1x1x256xf32> to vector<1x256xf32>
    %c5 = arith.constant 5 : index
    %c0_17 = arith.constant 0 : index
    %c0_18 = arith.constant 0 : index
    %14 = vector.load %arg2[%c5, %c0_17, %c0_18] : memref<9x1x256xf32, #tpu.memory_space<vmem>>, vector<1x1x256xf32>
    %15 = vector.shape_cast %14 : vector<1x1x256xf32> to vector<1x256xf32>
    %c6 = arith.constant 6 : index
    %c0_19 = arith.constant 0 : index
    %c0_20 = arith.constant 0 : index
    %16 = vector.load %arg2[%c6, %c0_19, %c0_20] : memref<9x1x256xf32, #tpu.memory_space<vmem>>, vector<1x1x256xf32>
    %17 = vector.shape_cast %16 : vector<1x1x256xf32> to vector<1x256xf32>
    %c7 = arith.constant 7 : index
    %c0_21 = arith.constant 0 : index
    %c0_22 = arith.constant 0 : index
    %18 = vector.load %arg2[%c7, %c0_21, %c0_22] : memref<9x1x256xf32, #tpu.memory_space<vmem>>, vector<1x1x256xf32>
    %19 = vector.shape_cast %18 : vector<1x1x256xf32> to vector<1x256xf32>
    %c8 = arith.constant 8 : index
    %c0_23 = arith.constant 0 : index
    %c0_24 = arith.constant 0 : index
    %20 = vector.load %arg2[%c8, %c0_23, %c0_24] : memref<9x1x256xf32, #tpu.memory_space<vmem>>, vector<1x1x256xf32>
    %21 = vector.shape_cast %20 : vector<1x1x256xf32> to vector<1x256xf32>
    %c0_25 = arith.constant 0 : index
    %c0_26 = arith.constant 0 : index
    %22 = vector.load %arg3[%c0_25, %c0_26] : memref<16x4xf32, #tpu.memory_space<vmem>>, vector<16x4xf32>
    %cst = arith.constant dense<0.000000e+00> : vector<16x256xf32>
    %23 = tpu.matmul %22, %1, %cst {dimension_numbers = #tpu.dot_dimension_numbers<[1], [0], [0], [1], [0, 0, 1, 1], [], []>} : vector<16x4xf32>, vector<4x256xf32>, vector<16x256xf32> -> vector<16x256xf32>
    %24 = vector.extract_strided_slice %2 {offsets = [0, 0], sizes = [16, 1], strides = [1, 1]} : vector<48x1xf32> to vector<16x1xf32>
    %25 = vector.broadcast %24 : vector<16x1xf32> to vector<16x256xf32>
    %26 = arith.mulf %23, %25 : vector<16x256xf32>
    %27 = vector.extract_strided_slice %3 {offsets = [0, 0], sizes = [16, 1], strides = [1, 1]} : vector<48x1xf32> to vector<16x1xf32>
    %28 = vector.broadcast %27 : vector<16x1xf32> to vector<16x256xf32>
    %29 = arith.addf %26, %28 : vector<16x256xf32>
    %cst_27 = arith.constant 0.000000e+00 : f32
    %30 = vector.broadcast %cst_27 : f32 to vector<16x256xf32>
    %31 = arith.maximumf %29, %30 : vector<16x256xf32>
    %32 = vector.extract_strided_slice %31 {offsets = [0, 0], sizes = [8, 256], strides = [1, 1]} : vector<16x256xf32> to vector<8x256xf32>
    %33 = vector.extract_strided_slice %31 {offsets = [8, 0], sizes = [8, 256], strides = [1, 1]} : vector<16x256xf32> to vector<8x256xf32>
    %c0_28 = arith.constant 0 : index
    %c0_29 = arith.constant 0 : index
    %34 = vector.load %arg4[%c0_28, %c0_29] : memref<16x72xf32, #tpu.memory_space<vmem>>, vector<16x72xf32>
    %35 = vector.extract_strided_slice %2 {offsets = [16, 0], sizes = [16, 1], strides = [1, 1]} : vector<48x1xf32> to vector<16x1xf32>
    %36 = vector.extract_strided_slice %3 {offsets = [16, 0], sizes = [16, 1], strides = [1, 1]} : vector<48x1xf32> to vector<16x1xf32>
    %c17_i32 = arith.constant 17 : i32
    %37 = tpu.dynamic_rotate %33 by %c17_i32 dim 1 : vector<8x256xf32>, i32 -> vector<8x256xf32>
    %38 = vector.broadcast %5 : vector<1x256xf32> to vector<8x256xf32>
    %39 = arith.mulf %37, %38 : vector<8x256xf32>
    %c16_i32 = arith.constant 16 : i32
    %40 = tpu.dynamic_rotate %33 by %c16_i32 dim 1 : vector<8x256xf32>, i32 -> vector<8x256xf32>
    %41 = vector.broadcast %7 : vector<1x256xf32> to vector<8x256xf32>
    %42 = arith.mulf %40, %41 : vector<8x256xf32>
    %c15_i32 = arith.constant 15 : i32
    %43 = tpu.dynamic_rotate %33 by %c15_i32 dim 1 : vector<8x256xf32>, i32 -> vector<8x256xf32>
    %44 = vector.broadcast %9 : vector<1x256xf32> to vector<8x256xf32>
    %45 = arith.mulf %43, %44 : vector<8x256xf32>
    %c1_i32 = arith.constant 1 : i32
    %46 = tpu.dynamic_rotate %33 by %c1_i32 dim 1 : vector<8x256xf32>, i32 -> vector<8x256xf32>
    %47 = vector.broadcast %11 : vector<1x256xf32> to vector<8x256xf32>
    %48 = arith.mulf %46, %47 : vector<8x256xf32>
    %49 = vector.broadcast %13 : vector<1x256xf32> to vector<8x256xf32>
    %50 = arith.mulf %33, %49 : vector<8x256xf32>
    %c255_i32 = arith.constant 255 : i32
    %51 = tpu.dynamic_rotate %33 by %c255_i32 dim 1 : vector<8x256xf32>, i32 -> vector<8x256xf32>
    %52 = vector.broadcast %15 : vector<1x256xf32> to vector<8x256xf32>
    %53 = arith.mulf %51, %52 : vector<8x256xf32>
    %c241_i32 = arith.constant 241 : i32
    %54 = tpu.dynamic_rotate %33 by %c241_i32 dim 1 : vector<8x256xf32>, i32 -> vector<8x256xf32>
    %55 = vector.broadcast %17 : vector<1x256xf32> to vector<8x256xf32>
    %56 = arith.mulf %54, %55 : vector<8x256xf32>
    %c240_i32 = arith.constant 240 : i32
    %57 = tpu.dynamic_rotate %33 by %c240_i32 dim 1 : vector<8x256xf32>, i32 -> vector<8x256xf32>
    %58 = vector.broadcast %19 : vector<1x256xf32> to vector<8x256xf32>
    %59 = arith.mulf %57, %58 : vector<8x256xf32>
    %c239_i32 = arith.constant 239 : i32
    %60 = tpu.dynamic_rotate %33 by %c239_i32 dim 1 : vector<8x256xf32>, i32 -> vector<8x256xf32>
    %61 = vector.broadcast %21 : vector<1x256xf32> to vector<8x256xf32>
    %62 = arith.mulf %60, %61 : vector<8x256xf32>
    %63 = tpu.concatenate %39, %42, %45, %48, %50, %53, %56, %59, %62 in 0 : vector<8x256xf32>, vector<8x256xf32>, vector<8x256xf32>, vector<8x256xf32>, vector<8x256xf32>, vector<8x256xf32>, vector<8x256xf32>, vector<8x256xf32>, vector<8x256xf32> -> vector<72x256xf32>
    %cst_30 = arith.constant dense<0.000000e+00> : vector<16x256xf32>
    %64 = tpu.matmul %34, %63, %cst_30 {dimension_numbers = #tpu.dot_dimension_numbers<[1], [0], [0], [1], [0, 0, 1, 1], [], []>} : vector<16x72xf32>, vector<72x256xf32>, vector<16x256xf32> -> vector<16x256xf32>
    %65 = vector.broadcast %35 : vector<16x1xf32> to vector<16x256xf32>
    %66 = arith.mulf %64, %65 : vector<16x256xf32>
    %67 = vector.broadcast %36 : vector<16x1xf32> to vector<16x256xf32>
    %68 = arith.addf %66, %67 : vector<16x256xf32>
    %cst_31 = arith.constant 0.000000e+00 : f32
    %69 = vector.broadcast %cst_31 : f32 to vector<16x256xf32>
    %70 = arith.maximumf %68, %69 : vector<16x256xf32>
    %71 = vector.extract_strided_slice %70 {offsets = [0, 0], sizes = [8, 256], strides = [1, 1]} : vector<16x256xf32> to vector<8x256xf32>
    %72 = vector.extract_strided_slice %70 {offsets = [8, 0], sizes = [8, 256], strides = [1, 1]} : vector<16x256xf32> to vector<8x256xf32>
    %c0_32 = arith.constant 0 : index
    %c0_33 = arith.constant 0 : index
    %73 = vector.load %arg5[%c0_32, %c0_33] : memref<8x72xf32, #tpu.memory_space<vmem>>, vector<8x72xf32>
    %74 = vector.extract_strided_slice %2 {offsets = [32, 0], sizes = [8, 1], strides = [1, 1]} : vector<48x1xf32> to vector<8x1xf32>
    %75 = vector.extract_strided_slice %3 {offsets = [32, 0], sizes = [8, 1], strides = [1, 1]} : vector<48x1xf32> to vector<8x1xf32>
    %c17_i32_34 = arith.constant 17 : i32
    %76 = tpu.dynamic_rotate %72 by %c17_i32_34 dim 1 : vector<8x256xf32>, i32 -> vector<8x256xf32>
    %77 = vector.broadcast %5 : vector<1x256xf32> to vector<8x256xf32>
    %78 = arith.mulf %76, %77 : vector<8x256xf32>
    %c16_i32_35 = arith.constant 16 : i32
    %79 = tpu.dynamic_rotate %72 by %c16_i32_35 dim 1 : vector<8x256xf32>, i32 -> vector<8x256xf32>
    %80 = vector.broadcast %7 : vector<1x256xf32> to vector<8x256xf32>
    %81 = arith.mulf %79, %80 : vector<8x256xf32>
    %c15_i32_36 = arith.constant 15 : i32
    %82 = tpu.dynamic_rotate %72 by %c15_i32_36 dim 1 : vector<8x256xf32>, i32 -> vector<8x256xf32>
    %83 = vector.broadcast %9 : vector<1x256xf32> to vector<8x256xf32>
    %84 = arith.mulf %82, %83 : vector<8x256xf32>
    %c1_i32_37 = arith.constant 1 : i32
    %85 = tpu.dynamic_rotate %72 by %c1_i32_37 dim 1 : vector<8x256xf32>, i32 -> vector<8x256xf32>
    %86 = vector.broadcast %11 : vector<1x256xf32> to vector<8x256xf32>
    %87 = arith.mulf %85, %86 : vector<8x256xf32>
    %88 = vector.broadcast %13 : vector<1x256xf32> to vector<8x256xf32>
    %89 = arith.mulf %72, %88 : vector<8x256xf32>
    %c255_i32_38 = arith.constant 255 : i32
    %90 = tpu.dynamic_rotate %72 by %c255_i32_38 dim 1 : vector<8x256xf32>, i32 -> vector<8x256xf32>
    %91 = vector.broadcast %15 : vector<1x256xf32> to vector<8x256xf32>
    %92 = arith.mulf %90, %91 : vector<8x256xf32>
    %c241_i32_39 = arith.constant 241 : i32
    %93 = tpu.dynamic_rotate %72 by %c241_i32_39 dim 1 : vector<8x256xf32>, i32 -> vector<8x256xf32>
    %94 = vector.broadcast %17 : vector<1x256xf32> to vector<8x256xf32>
    %95 = arith.mulf %93, %94 : vector<8x256xf32>
    %c240_i32_40 = arith.constant 240 : i32
    %96 = tpu.dynamic_rotate %72 by %c240_i32_40 dim 1 : vector<8x256xf32>, i32 -> vector<8x256xf32>
    %97 = vector.broadcast %19 : vector<1x256xf32> to vector<8x256xf32>
    %98 = arith.mulf %96, %97 : vector<8x256xf32>
    %c239_i32_41 = arith.constant 239 : i32
    %99 = tpu.dynamic_rotate %72 by %c239_i32_41 dim 1 : vector<8x256xf32>, i32 -> vector<8x256xf32>
    %100 = vector.broadcast %21 : vector<1x256xf32> to vector<8x256xf32>
    %101 = arith.mulf %99, %100 : vector<8x256xf32>
    %102 = tpu.concatenate %78, %81, %84, %87, %89, %92, %95, %98, %101 in 0 : vector<8x256xf32>, vector<8x256xf32>, vector<8x256xf32>, vector<8x256xf32>, vector<8x256xf32>, vector<8x256xf32>, vector<8x256xf32>, vector<8x256xf32>, vector<8x256xf32> -> vector<72x256xf32>
    %cst_42 = arith.constant dense<0.000000e+00> : vector<8x256xf32>
    %103 = tpu.matmul %73, %102, %cst_42 {dimension_numbers = #tpu.dot_dimension_numbers<[1], [0], [0], [1], [0, 0, 1, 1], [], []>} : vector<8x72xf32>, vector<72x256xf32>, vector<8x256xf32> -> vector<8x256xf32>
    %104 = vector.broadcast %74 : vector<8x1xf32> to vector<8x256xf32>
    %105 = arith.mulf %103, %104 : vector<8x256xf32>
    %106 = vector.broadcast %75 : vector<8x1xf32> to vector<8x256xf32>
    %107 = arith.addf %105, %106 : vector<8x256xf32>
    %cst_43 = arith.constant 0.000000e+00 : f32
    %108 = vector.broadcast %cst_43 : f32 to vector<8x256xf32>
    %109 = arith.maximumf %107, %108 : vector<8x256xf32>
    %cst_44 = arith.constant 5.000000e-01 : f32
    %110 = vector.broadcast %cst_44 : f32 to vector<1x256xf32>
    %111 = arith.cmpf ogt, %5, %110 : vector<1x256xf32>
    %c17_i32_45 = arith.constant 17 : i32
    %112 = tpu.dynamic_rotate %1 by %c17_i32_45 dim 1 : vector<4x256xf32>, i32 -> vector<4x256xf32>
    %cst_46 = arith.constant -3.000000e+38 : f32
    %113 = vector.shape_cast %111 : vector<1x256xi1> to vector<1x256xi1>
    %114 = vector.broadcast %113 : vector<1x256xi1> to vector<4x256xi1>
    %115 = vector.broadcast %cst_46 : f32 to vector<4x256xf32>
    %116 = arith.select %114, %112, %115 : vector<4x256xi1>, vector<4x256xf32>
    %117 = arith.maximumf %1, %116 : vector<4x256xf32>
    %cst_47 = arith.constant 5.000000e-01 : f32
    %118 = vector.broadcast %cst_47 : f32 to vector<1x256xf32>
    %119 = arith.cmpf ogt, %7, %118 : vector<1x256xf32>
    %c16_i32_48 = arith.constant 16 : i32
    %120 = tpu.dynamic_rotate %1 by %c16_i32_48 dim 1 : vector<4x256xf32>, i32 -> vector<4x256xf32>
    %cst_49 = arith.constant -3.000000e+38 : f32
    %121 = vector.shape_cast %119 : vector<1x256xi1> to vector<1x256xi1>
    %122 = vector.broadcast %121 : vector<1x256xi1> to vector<4x256xi1>
    %123 = vector.broadcast %cst_49 : f32 to vector<4x256xf32>
    %124 = arith.select %122, %120, %123 : vector<4x256xi1>, vector<4x256xf32>
    %125 = arith.maximumf %117, %124 : vector<4x256xf32>
    %cst_50 = arith.constant 5.000000e-01 : f32
    %126 = vector.broadcast %cst_50 : f32 to vector<1x256xf32>
    %127 = arith.cmpf ogt, %9, %126 : vector<1x256xf32>
    %c15_i32_51 = arith.constant 15 : i32
    %128 = tpu.dynamic_rotate %1 by %c15_i32_51 dim 1 : vector<4x256xf32>, i32 -> vector<4x256xf32>
    %cst_52 = arith.constant -3.000000e+38 : f32
    %129 = vector.shape_cast %127 : vector<1x256xi1> to vector<1x256xi1>
    %130 = vector.broadcast %129 : vector<1x256xi1> to vector<4x256xi1>
    %131 = vector.broadcast %cst_52 : f32 to vector<4x256xf32>
    %132 = arith.select %130, %128, %131 : vector<4x256xi1>, vector<4x256xf32>
    %133 = arith.maximumf %125, %132 : vector<4x256xf32>
    %cst_53 = arith.constant 5.000000e-01 : f32
    %134 = vector.broadcast %cst_53 : f32 to vector<1x256xf32>
    %135 = arith.cmpf ogt, %11, %134 : vector<1x256xf32>
    %c1_i32_54 = arith.constant 1 : i32
    %136 = tpu.dynamic_rotate %1 by %c1_i32_54 dim 1 : vector<4x256xf32>, i32 -> vector<4x256xf32>
    %cst_55 = arith.constant -3.000000e+38 : f32
    %137 = vector.shape_cast %135 : vector<1x256xi1> to vector<1x256xi1>
    %138 = vector.broadcast %137 : vector<1x256xi1> to vector<4x256xi1>
    %139 = vector.broadcast %cst_55 : f32 to vector<4x256xf32>
    %140 = arith.select %138, %136, %139 : vector<4x256xi1>, vector<4x256xf32>
    %141 = arith.maximumf %133, %140 : vector<4x256xf32>
    %cst_56 = arith.constant 5.000000e-01 : f32
    %142 = vector.broadcast %cst_56 : f32 to vector<1x256xf32>
    %143 = arith.cmpf ogt, %15, %142 : vector<1x256xf32>
    %c255_i32_57 = arith.constant 255 : i32
    %144 = tpu.dynamic_rotate %1 by %c255_i32_57 dim 1 : vector<4x256xf32>, i32 -> vector<4x256xf32>
    %cst_58 = arith.constant -3.000000e+38 : f32
    %145 = vector.shape_cast %143 : vector<1x256xi1> to vector<1x256xi1>
    %146 = vector.broadcast %145 : vector<1x256xi1> to vector<4x256xi1>
    %147 = vector.broadcast %cst_58 : f32 to vector<4x256xf32>
    %148 = arith.select %146, %144, %147 : vector<4x256xi1>, vector<4x256xf32>
    %149 = arith.maximumf %141, %148 : vector<4x256xf32>
    %cst_59 = arith.constant 5.000000e-01 : f32
    %150 = vector.broadcast %cst_59 : f32 to vector<1x256xf32>
    %151 = arith.cmpf ogt, %17, %150 : vector<1x256xf32>
    %c241_i32_60 = arith.constant 241 : i32
    %152 = tpu.dynamic_rotate %1 by %c241_i32_60 dim 1 : vector<4x256xf32>, i32 -> vector<4x256xf32>
    %cst_61 = arith.constant -3.000000e+38 : f32
    %153 = vector.shape_cast %151 : vector<1x256xi1> to vector<1x256xi1>
    %154 = vector.broadcast %153 : vector<1x256xi1> to vector<4x256xi1>
    %155 = vector.broadcast %cst_61 : f32 to vector<4x256xf32>
    %156 = arith.select %154, %152, %155 : vector<4x256xi1>, vector<4x256xf32>
    %157 = arith.maximumf %149, %156 : vector<4x256xf32>
    %cst_62 = arith.constant 5.000000e-01 : f32
    %158 = vector.broadcast %cst_62 : f32 to vector<1x256xf32>
    %159 = arith.cmpf ogt, %19, %158 : vector<1x256xf32>
    %c240_i32_63 = arith.constant 240 : i32
    %160 = tpu.dynamic_rotate %1 by %c240_i32_63 dim 1 : vector<4x256xf32>, i32 -> vector<4x256xf32>
    %cst_64 = arith.constant -3.000000e+38 : f32
    %161 = vector.shape_cast %159 : vector<1x256xi1> to vector<1x256xi1>
    %162 = vector.broadcast %161 : vector<1x256xi1> to vector<4x256xi1>
    %163 = vector.broadcast %cst_64 : f32 to vector<4x256xf32>
    %164 = arith.select %162, %160, %163 : vector<4x256xi1>, vector<4x256xf32>
    %165 = arith.maximumf %157, %164 : vector<4x256xf32>
    %cst_65 = arith.constant 5.000000e-01 : f32
    %166 = vector.broadcast %cst_65 : f32 to vector<1x256xf32>
    %167 = arith.cmpf ogt, %21, %166 : vector<1x256xf32>
    %c239_i32_66 = arith.constant 239 : i32
    %168 = tpu.dynamic_rotate %1 by %c239_i32_66 dim 1 : vector<4x256xf32>, i32 -> vector<4x256xf32>
    %cst_67 = arith.constant -3.000000e+38 : f32
    %169 = vector.shape_cast %167 : vector<1x256xi1> to vector<1x256xi1>
    %170 = vector.broadcast %169 : vector<1x256xi1> to vector<4x256xi1>
    %171 = vector.broadcast %cst_67 : f32 to vector<4x256xf32>
    %172 = arith.select %170, %168, %171 : vector<4x256xi1>, vector<4x256xf32>
    %173 = arith.maximumf %165, %172 : vector<4x256xf32>
    %c0_68 = arith.constant 0 : index
    %c0_69 = arith.constant 0 : index
    %174 = vector.load %arg6[%c0_68, %c0_69] : memref<8x4xf32, #tpu.memory_space<vmem>>, vector<8x4xf32>
    %cst_70 = arith.constant dense<0.000000e+00> : vector<8x256xf32>
    %175 = tpu.matmul %174, %173, %cst_70 {dimension_numbers = #tpu.dot_dimension_numbers<[1], [0], [0], [1], [0, 0, 1, 1], [], []>} : vector<8x4xf32>, vector<4x256xf32>, vector<8x256xf32> -> vector<8x256xf32>
    %176 = vector.extract_strided_slice %2 {offsets = [40, 0], sizes = [8, 1], strides = [1, 1]} : vector<48x1xf32> to vector<8x1xf32>
    %177 = vector.broadcast %176 : vector<8x1xf32> to vector<8x256xf32>
    %178 = arith.mulf %175, %177 : vector<8x256xf32>
    %179 = vector.extract_strided_slice %3 {offsets = [40, 0], sizes = [8, 1], strides = [1, 1]} : vector<48x1xf32> to vector<8x1xf32>
    %180 = vector.broadcast %179 : vector<8x1xf32> to vector<8x256xf32>
    %181 = arith.addf %178, %180 : vector<8x256xf32>
    %cst_71 = arith.constant 0.000000e+00 : f32
    %182 = vector.broadcast %cst_71 : f32 to vector<8x256xf32>
    %183 = arith.maximumf %181, %182 : vector<8x256xf32>
    %184 = tpu.concatenate %32, %71, %109, %183 in 0 : vector<8x256xf32>, vector<8x256xf32>, vector<8x256xf32>, vector<8x256xf32> -> vector<32x256xf32>
    %c0_72 = arith.constant 0 : index
    %c0_73 = arith.constant 0 : index
    %c0_74 = arith.constant 0 : index
    %185 = vector.load %arg9[%c0_72, %c0_73, %c0_74] : memref<1x32x256xf32, #tpu.memory_space<vmem>>, vector<1x32x256xf32>
    %186 = vector.shape_cast %185 : vector<1x32x256xf32> to vector<32x256xf32>
    %187 = vector.shape_cast %184 : vector<32x256xf32> to vector<1x32x256xf32>
    tpu.vector_store %arg9[%c0_72, %c0_73, %c0_74], %187 {strides = array<i32>} : memref<1x32x256xf32, #tpu.memory_space<vmem>>, vector<1x32x256xf32>,
    return
  }
  func.func @transform_0(%arg0: i32) -> (i32, i32, i32) {
    %c0_i32 = arith.constant 0 : i32
    %c0_i32_0 = arith.constant 0 : i32
    %c0_i32_1 = arith.constant 0 : i32
    return %arg0, %c0_i32, %c0_i32_0 : i32, i32, i32
  }
  func.func @transform_1(%arg0: i32) -> (i32, i32, i32) {
    %c0_i32 = arith.constant 0 : i32
    %c0_i32_0 = arith.constant 0 : i32
    %c0_i32_1 = arith.constant 0 : i32
    %c0_i32_2 = arith.constant 0 : i32
    return %c0_i32, %c0_i32_0, %c0_i32_1 : i32, i32, i32
  }
  func.func @transform_2(%arg0: i32) -> (i32, i32) {
    %c0_i32 = arith.constant 0 : i32
    %c0_i32_0 = arith.constant 0 : i32
    %c0_i32_1 = arith.constant 0 : i32
    return %c0_i32, %c0_i32_0 : i32, i32
  }
  func.func @transform_3(%arg0: i32) -> (i32, i32) {
    %c0_i32 = arith.constant 0 : i32
    %c0_i32_0 = arith.constant 0 : i32
    %c0_i32_1 = arith.constant 0 : i32
    return %c0_i32, %c0_i32_0 : i32, i32
  }
  func.func @transform_4(%arg0: i32) -> (i32, i32) {
    %c0_i32 = arith.constant 0 : i32
    %c0_i32_0 = arith.constant 0 : i32
    %c0_i32_1 = arith.constant 0 : i32
    return %c0_i32, %c0_i32_0 : i32, i32
  }
  func.func @transform_5(%arg0: i32) -> (i32, i32) {
    %c0_i32 = arith.constant 0 : i32
    %c0_i32_0 = arith.constant 0 : i32
    %c0_i32_1 = arith.constant 0 : i32
    return %c0_i32, %c0_i32_0 : i32, i32
  }
  func.func @transform_6(%arg0: i32) -> (i32, i32) {
    %c0_i32 = arith.constant 0 : i32
    %c0_i32_0 = arith.constant 0 : i32
    %c0_i32_1 = arith.constant 0 : i32
    return %c0_i32, %c0_i32_0 : i32, i32
  }
  func.func @transform_7(%arg0: i32) -> (i32, i32) {
    %c0_i32 = arith.constant 0 : i32
    %c0_i32_0 = arith.constant 0 : i32
    %c0_i32_1 = arith.constant 0 : i32
    return %c0_i32, %c0_i32_0 : i32, i32
  }
  func.func @transform_8(%arg0: i32) -> (i32, i32, i32) {
    %c0_i32 = arith.constant 0 : i32
    %c0_i32_0 = arith.constant 0 : i32
    %c0_i32_1 = arith.constant 0 : i32
    return %arg0, %c0_i32, %c0_i32_0 : i32, i32, i32
  }
}

</mosaic_0001>

<llo_original>
// kernel: tpu_custom_call.1
$region0: #{tpu_custom_call.1}
  #allocation0 [shape = 'u32[]', space=smem, size = 0x4, offset = 0x4, fixed_abs, tag = 'smem constant byte address 0x4 - core index']
  #allocation1 [shape = 'u32[72,128]{1,0:T(1,128)}', space=vmem, size = 0x9000, scoped, tag = 'internal scratch']
  %s0 = inlined_call_operand.vmem [shape: f32[2,4,256], index: 0, kind: input, shape index: {}]
  %s1 = inlined_call_operand.vmem [shape: f32[9,1,256], index: 1, kind: input, shape index: {}]
  %s2 = inlined_call_operand.vmem [shape: f32[16,4], index: 2, kind: input, shape index: {}]
  %s3 = inlined_call_operand.vmem [shape: f32[16,72], index: 3, kind: input, shape index: {}]
  %s4 = inlined_call_operand.vmem [shape: f32[8,72], index: 4, kind: input, shape index: {}]
  %s5 = inlined_call_operand.vmem [shape: f32[8,4], index: 5, kind: input, shape index: {}]
  %s6 = inlined_call_operand.vmem [shape: f32[48,1], index: 6, kind: input, shape index: {}]
  %s7 = inlined_call_operand.vmem [shape: f32[48,1], index: 7, kind: input, shape index: {}]
  %s8 = inlined_call_operand.hbm [shape: f32[2,32,256], index: 8, kind: output, shape index: {}]
  %s9 = sld [smem:[#allocation0]]
  $region65: #{tpu_custom_call.1} parent=0
    _
  %s11 = ssub.s32 1, %s9
  %s12 = scalar_select 0, %s11, %s9
  $region1: #{tpu_custom_call.1} parent=0
    #allocation2 [shape = 'u8[65536]{0}', space=vmem, size = 0x10000, scoped, tag = 'output window, operand 0']
    #allocation3 [shape = 's32[2]{0}', space=sflag, size = 0x8, scoped, tag = 'scoped memory for tpu_custom_call.1']
    %13 = vsyncpa [#allocation3], 0
    %s14 = scalar_lea.sflag [#allocation3], 1
    %15 = vsyncpa %s14, 0
    loop: start=0, step=1, limit=4
    $region2: #{tpu_custom_call.1} parent=1 // loop_pre_header
      _
    $region3: #{tpu_custom_call.1} parent=1 // loop_header
      %s17 = sphi 0, %s21
      %p18 = scmp.ge.s32.totalorder %s17, 4
      %s27 = sphi 0, %s29
      %s30 = sphi 0, %s27
      %s31 = sphi 0, %s30
      %s47 = sphi 0, %s31
      %s51 = sphi 0, %s51
      %s53 = sphi 0, %s51
      %s54 = sphi 0, %s53
      %s68 = sphi 0, %s54
      %s72 = sphi 0, %s72
      %s74 = sphi 0, %s72
      %s75 = sphi 0, %s74
      %s89 = sphi 0, %s75
      %s93 = sphi 0, %s93
      %s95 = sphi 0, %s93
      %s96 = sphi 0, %s95
      %s110 = sphi 0, %s96
      %s114 = sphi 0, %s114
      %s116 = sphi 0, %s114
      %s117 = sphi 0, %s116
      %s131 = sphi 0, %s117
      %s135 = sphi 0, %s135
      %s137 = sphi 0, %s135
      %s138 = sphi 0, %s137
      %s152 = sphi 0, %s138
      %s156 = sphi 0, %s156
      %s158 = sphi 0, %s156
      %s159 = sphi 0, %s158
      %s173 = sphi 0, %s159
      %s177 = sphi 0, %s177
      %s179 = sphi 0, %s177
      %s180 = sphi 0, %s179
      %s194 = sphi 0, %s180
      %s200 = sphi 0, %s202
      %s203 = sphi 0, %s200
      %s204 = sphi 0, %s203
      %s220 = sphi 0, %s204
    $region4: #{tpu_custom_call.1} parent=1 // loop_header_branch
      %20 = sbr.rel (%p18) target = $region8
    $region5: #{tpu_custom_call.1} parent=1 // loop_body
      %s22 = ssub.s32 %s17, 1
      %s23 = ssub.s32 %s17, 2
      %s24 = sadd.s32 %s17, 1
      %s25 = ssub.s32 %s17, %s24
      %p26 = scmp.eq.s32.totalorder %s25, 0
      %s28 = sadd.s32 %s27, 1
      %s29 = scalar_select %p26, %s27, %s28
      %p32 = pneg %p26
      %p33 = scmp.eq.s32.totalorder %s17, 1
      %p34 = por %p32, %p33
      %p35 = scmp.ne.s32.totalorder %s27, %s30
      %p36 = scmp.eq.s32.totalorder %s17, 0
      %p37 = por %p35, %p36
      %p38 = scmp.ne.s32.totalorder %s27, %s30
      %p39 = scmp.eq.s32.totalorder %s22, 1
      %p40 = por %p38, %p39
      %p41 = scmp.ne.s32.totalorder %s30, %s31
      %p42 = scmp.eq.s32.totalorder %s22, 0
      %p43 = por %p41, %p42
      %p44 = scmp.ne.s32.totalorder %s30, %s31
      %p45 = scmp.eq.s32.totalorder %s23, 1
      %p46 = por %p44, %p45
      %p48 = scmp.ne.s32.totalorder %s31, %s47
      %p49 = scmp.eq.s32.totalorder %s23, 0
      %p50 = por %p48, %p49
      %s52 = sadd.s32 %s51, 1
      %p55 = scmp.eq.s32.totalorder %s17, 1
      %p56 = scmp.ne.s32.totalorder %s51, %s53
      %p57 = scmp.eq.s32.totalorder %s17, 0
      %p58 = por %p56, %p57
      %p59 = scmp.ne.s32.totalorder %s51, %s53
      %p60 = scmp.eq.s32.totalorder %s22, 1
      %p61 = por %p59, %p60
      %p62 = scmp.ne.s32.totalorder %s53, %s54
      %p63 = scmp.eq.s32.totalorder %s22, 0
      %p64 = por %p62, %p63
      %p65 = scmp.ne.s32.totalorder %s53, %s54
      %p66 = scmp.eq.s32.totalorder %s23, 1
      %p67 = por %p65, %p66
      %p69 = scmp.ne.s32.totalorder %s54, %s68
      %p70 = scmp.eq.s32.totalorder %s23, 0
      %p71 = por %p69, %p70
      %s73 = sadd.s32 %s72, 1
      %p76 = scmp.eq.s32.totalorder %s17, 1
      %p77 = scmp.ne.s32.totalorder %s72, %s74
      %p78 = scmp.eq.s32.totalorder %s17, 0
      %p79 = por %p77, %p78
      %p80 = scmp.ne.s32.totalorder %s72, %s74
      %p81 = scmp.eq.s32.totalorder %s22, 1
      %p82 = por %p80, %p81
      %p83 = scmp.ne.s32.totalorder %s74, %s75
      %p84 = scmp.eq.s32.totalorder %s22, 0
      %p85 = por %p83, %p84
      %p86 = scmp.ne.s32.totalorder %s74, %s75
      %p87 = scmp.eq.s32.totalorder %s23, 1
      %p88 = por %p86, %p87
      %p90 = scmp.ne.s32.totalorder %s75, %s89
      %p91 = scmp.eq.s32.totalorder %s23, 0
      %p92 = por %p90, %p91
      %s94 = sadd.s32 %s93, 1
      %p97 = scmp.eq.s32.totalorder %s17, 1
      %p98 = scmp.ne.s32.totalorder %s93, %s95
      %p99 = scmp.eq.s32.totalorder %s17, 0
      %p100 = por %p98, %p99
      %p101 = scmp.ne.s32.totalorder %s93, %s95
      %p102 = scmp.eq.s32.totalorder %s22, 1
      %p103 = por %p101, %p102
      %p104 = scmp.ne.s32.totalorder %s95, %s96
      %p105 = scmp.eq.s32.totalorder %s22, 0
      %p106 = por %p104, %p105
      %p107 = scmp.ne.s32.totalorder %s95, %s96
      %p108 = scmp.eq.s32.totalorder %s23, 1
      %p109 = por %p107, %p108
      %p111 = scmp.ne.s32.totalorder %s96, %s110
      %p112 = scmp.eq.s32.totalorder %s23, 0
      %p113 = por %p111, %p112
      %s115 = sadd.s32 %s114, 1
      %p118 = scmp.eq.s32.totalorder %s17, 1
      %p119 = scmp.ne.s32.totalorder %s114, %s116
      %p120 = scmp.eq.s32.totalorder %s17, 0
      %p121 = por %p119, %p120
      %p122 = scmp.ne.s32.totalorder %s114, %s116
      %p123 = scmp.eq.s32.totalorder %s22, 1
      %p124 = por %p122, %p123
      %p125 = scmp.ne.s32.totalorder %s116, %s117
      %p126 = scmp.eq.s32.totalorder %s22, 0
      %p127 = por %p125, %p126
      %p128 = scmp.ne.s32.totalorder %s116, %s117
      %p129 = scmp.eq.s32.totalorder %s23, 1
      %p130 = por %p128, %p129
      %p132 = scmp.ne.s32.totalorder %s117, %s131
      %p133 = scmp.eq.s32.totalorder %s23, 0
      %p134 = por %p132, %p133
      %s136 = sadd.s32 %s135, 1
      %p139 = scmp.eq.s32.totalorder %s17, 1
      %p140 = scmp.ne.s32.totalorder %s135, %s137
      %p141 = scmp.eq.s32.totalorder %s17, 0
      %p142 = por %p140, %p141
      %p143 = scmp.ne.s32.totalorder %s135, %s137
      %p144 = scmp.eq.s32.totalorder %s22, 1
      %p145 = por %p143, %p144
      %p146 = scmp.ne.s32.totalorder %s137, %s138
      %p147 = scmp.eq.s32.totalorder %s22, 0
      %p148 = por %p146, %p147
      %p149 = scmp.ne.s32.totalorder %s137, %s138
      %p150 = scmp.eq.s32.totalorder %s23, 1
      %p151 = por %p149, %p150
      %p153 = scmp.ne.s32.totalorder %s138, %s152
      %p154 = scmp.eq.s32.totalorder %s23, 0
      %p155 = por %p153, %p154
      %s157 = sadd.s32 %s156, 1
      %p160 = scmp.eq.s32.totalorder %s17, 1
      %p161 = scmp.ne.s32.totalorder %s156, %s158
      %p162 = scmp.eq.s32.totalorder %s17, 0
      %p163 = por %p161, %p162
      %p164 = scmp.ne.s32.totalorder %s156, %s158
      %p165 = scmp.eq.s32.totalorder %s22, 1
      %p166 = por %p164, %p165
      %p167 = scmp.ne.s32.totalorder %s158, %s159
      %p168 = scmp.eq.s32.totalorder %s22, 0
      %p169 = por %p167, %p168
      %p170 = scmp.ne.s32.totalorder %s158, %s159
      %p171 = scmp.eq.s32.totalorder %s23, 1
      %p172 = por %p170, %p171
      %p174 = scmp.ne.s32.totalorder %s159, %s173
      %p175 = scmp.eq.s32.totalorder %s23, 0
      %p176 = por %p174, %p175
      %s178 = sadd.s32 %s177, 1
      %p181 = scmp.eq.s32.totalorder %s17, 1
      %p182 = scmp.ne.s32.totalorder %s177, %s179
      %p183 = scmp.eq.s32.totalorder %s17, 0
      %p184 = por %p182, %p183
      %p185 = scmp.ne.s32.totalorder %s177, %s179
      %p186 = scmp.eq.s32.totalorder %s22, 1
      %p187 = por %p185, %p186
      %p188 = scmp.ne.s32.totalorder %s179, %s180
      %p189 = scmp.eq.s32.totalorder %s22, 0
      %p190 = por %p188, %p189
      %p191 = scmp.ne.s32.totalorder %s179, %s180
      %p192 = scmp.eq.s32.totalorder %s23, 1
      %p193 = por %p191, %p192
      %p195 = scmp.ne.s32.totalorder %s180, %s194
      %p196 = scmp.eq.s32.totalorder %s23, 0
      %p197 = por %p195, %p196
      %s198 = ssub.s32 %s17, %s24
      %p199 = scmp.eq.s32.totalorder %s198, 0
      %s201 = sadd.s32 %s200, 1
      %s202 = scalar_select %p199, %s200, %s201
      %p205 = pneg %p199
      %p206 = scmp.eq.s32.totalorder %s17, 1
      %p207 = por %p205, %p206
      %p208 = scmp.ne.s32.totalorder %s200, %s203
      %p209 = scmp.eq.s32.totalorder %s17, 0
      %p210 = por %p208, %p209
      %p211 = scmp.ne.s32.totalorder %s200, %s203
      %p212 = scmp.eq.s32.totalorder %s22, 1
      %p213 = por %p211, %p212
      %p214 = scmp.ne.s32.totalorder %s203, %s204
      %p215 = scmp.eq.s32.totalorder %s22, 0
      %p216 = por %p214, %p215
      %p217 = scmp.ne.s32.totalorder %s203, %s204
      %p218 = scmp.eq.s32.totalorder %s23, 1
      %p219 = por %p217, %p218
      %p221 = scmp.ne.s32.totalorder %s204, %s220
      %p222 = scmp.eq.s32.totalorder %s23, 0
      %p223 = por %p221, %p222
      %p224 = scmp.le.s32.totalorder 1, %s17
      %p225 = scmp.lt.s32.totalorder %s17, 3
      %p226 = pnand %p224, %p225
      %p227 = pneg %p226
      // Predicated region
      $region9: #{tpu_custom_call.1} parent=5 // pred_check
        _
      $region10: #{tpu_custom_call.1} parent=5 // pred_check_branch
        %229 = sbr.rel (%p226) target = $region12
      $region11: #{tpu_custom_call.1} parent=5 // pred_region
        %s230 = ssub.s32 %s17, 1
        // Predicated region
        $region13: #{tpu_custom_call.1} parent=11 // pred_check
          %p231 = pneg %p64
        $region14: #{tpu_custom_call.1} parent=11 // pred_check_branch
          %233 = sbr.rel (%p231) target = $region16
        $region15: #{tpu_custom_call.1} parent=11 // pred_region
          _
        $region16: #{tpu_custom_call.1} parent=11 // pred_fallthru
          _
        // Predicated region
        $region17: #{tpu_custom_call.1} parent=11 // pred_check
          %p234 = pneg %p85
        $region18: #{tpu_custom_call.1} parent=11 // pred_check_branch
          %236 = sbr.rel (%p234) target = $region20
        $region19: #{tpu_custom_call.1} parent=11 // pred_region
          _
        $region20: #{tpu_custom_call.1} parent=11 // pred_fallthru
          _
        // Predicated region
        $region21: #{tpu_custom_call.1} parent=11 // pred_check
          %p237 = pneg %p106
        $region22: #{tpu_custom_call.1} parent=11 // pred_check_branch
          %239 = sbr.rel (%p237) target = $region24
        $region23: #{tpu_custom_call.1} parent=11 // pred_region
          _
        $region24: #{tpu_custom_call.1} parent=11 // pred_fallthru
          _
        // Predicated region
        $region25: #{tpu_custom_call.1} parent=11 // pred_check
          %p240 = pneg %p127
        $region26: #{tpu_custom_call.1} parent=11 // pred_check_branch
          %242 = sbr.rel (%p240) target = $region28
        $region27: #{tpu_custom_call.1} parent=11 // pred_region
          _
        $region28: #{tpu_custom_call.1} parent=11 // pred_fallthru
          _
        // Predicated region
        $region29: #{tpu_custom_call.1} parent=11 // pred_check
          %p243 = pneg %p148
        $region30: #{tpu_custom_call.1} parent=11 // pred_check_branch
          %245 = sbr.rel (%p243) target = $region32
        $region31: #{tpu_custom_call.1} parent=11 // pred_region
          _
        $region32: #{tpu_custom_call.1} parent=11 // pred_fallthru
          _
        // Predicated region
        $region33: #{tpu_custom_call.1} parent=11 // pred_check
          %p246 = pneg %p169
        $region34: #{tpu_custom_call.1} parent=11 // pred_check_branch
          %248 = sbr.rel (%p246) target = $region36
        $region35: #{tpu_custom_call.1} parent=11 // pred_region
          _
        $region36: #{tpu_custom_call.1} parent=11 // pred_fallthru
          _
        // Predicated region
        $region37: #{tpu_custom_call.1} parent=11 // pred_check
          %p249 = pneg %p190
        $region38: #{tpu_custom_call.1} parent=11 // pred_check_branch
          %251 = sbr.rel (%p249) target = $region40
        $region39: #{tpu_custom_call.1} parent=11 // pred_region
          _
        $region40: #{tpu_custom_call.1} parent=11 // pred_fallthru
          _
      $region12: #{tpu_custom_call.1} parent=5 // pred_fallthru
        _
      %p252 = scmp.lt.s32.totalorder %s17, 2
      // Predicated region
      $region41: #{tpu_custom_call.1} parent=5 // pred_check
        %p253 = pneg %p252
      $region42: #{tpu_custom_call.1} parent=5 // pred_check_branch
        %255 = sbr.rel (%p253) target = $region44
      $region43: #{tpu_custom_call.1} parent=5 // pred_region
        // Predicated region
        $region45: #{tpu_custom_call.1} parent=43 // pred_check
          %p256 = pneg %p37
        $region46: #{tpu_custom_call.1} parent=43 // pred_check_branch
          %258 = sbr.rel (%p256) target = $region48
        $region47: #{tpu_custom_call.1} parent=43 // pred_region
          %p259 = scmp.lt.s32.totalorder %s17, 1
          %s260 = scalar_select %p259, %s17, 1
          %s261 = smul.addr %s260, 2
          %s262 = smul.addr %s261, 4
          %s263 = scalar_lea.vmem %s0, %s262
        $region48: #{tpu_custom_call.1} parent=43 // pred_fallthru
          _
      $region44: #{tpu_custom_call.1} parent=5 // pred_fallthru
        _
      %p264 = scmp.le.s32.totalorder 1, %s17
      %p265 = scmp.lt.s32.totalorder %s17, 3
      %p266 = pnand %p264, %p265
      %p267 = pneg %p266
      // Predicated region
      $region49: #{tpu_custom_call.1} parent=5 // pred_check
        _
      $region50: #{tpu_custom_call.1} parent=5 // pred_check_branch
        %269 = sbr.rel (%p266) target = $region52
      $region51: #{tpu_custom_call.1} parent=5 // pred_region
        %s270 = ssub.s32 %s17, 1
        %p271 = scmp.lt.s32.totalorder %s22, 1
        %s272 = scalar_select %p271, %s22, 1
        %s273 = smul.addr %s272, 2
        %s274 = smul.addr %s273, 4
        %s275 = scalar_lea.vmem %s0, %s274
        %p276 = pneg %p43
        %p277 = pneg %p40
        %p278 = pneg %p64
        %p279 = pneg %p61
        %p280 = pneg %p85
        %p281 = pneg %p82
        %p282 = pneg %p106
        %p283 = pneg %p103
        %p284 = pneg %p127
        %p285 = pneg %p124
        %p286 = pneg %p148
        %p287 = pneg %p145
        %p288 = pneg %p169
        %p289 = pneg %p166
        %p290 = pneg %p190
        %p291 = pneg %p187
        %p292 = pneg %p216
        %p293 = pneg %p213
        %s294 = sand.u32 %s203, 1
        %s295 = scalar_lea.sflag [#allocation3], %s294
        %s296 = sand.u32 %s203, 1
        %s297 = smul.addr %s296, 64
        %s298 = scalar_lea.vmem [#allocation2], %s297
        %p299 = scmp.lt.s32.totalorder %s22, 1
        %s300 = scalar_select %p299, %s22, 1
        %s301 = smul.addr %s300, 2
        %s302 = smul.addr %s301, 4
        %s303 = scalar_lea.vmem %s0, %s302
        %v304 = vld [vmem:[%s303] sm:$0xff]
        %v305 = vld [vmem:[%s6] sm:$0xff]
        %v306 = vld [vmem:[%s6 + $0x8] sm:$0xff]
        %v307 = vld [vmem:[%s6 + $0x10] sm:$0xff]
        %v308 = vld [vmem:[%s6 + $0x18] sm:$0xff]
        %v309 = vld [vmem:[%s6 + $0x20] sm:$0xff]
        %v310 = vld [vmem:[%s6 + $0x28] sm:$0xff]
        %v311 = vld [vmem:[%s7] sm:$0xff]
        %v312 = vld [vmem:[%s7 + $0x8] sm:$0xff]
        %v313 = vld [vmem:[%s7 + $0x10] sm:$0xff]
        %v314 = vld [vmem:[%s7 + $0x18] sm:$0xff]
        %v315 = vld [vmem:[%s7 + $0x20] sm:$0xff]
        %v316 = vld [vmem:[%s7 + $0x28] sm:$0xff]
        %v317 = vld [vmem:[%s1] sm:$0x3]
        %s318 = scalar_lea.vmem %s1, 2
        %v319 = vld [vmem:[%s318] sm:$0x3]
        %s320 = scalar_lea.vmem %s1, 4
        %v321 = vld [vmem:[%s320] sm:$0x3]
        %s322 = scalar_lea.vmem %s1, 6
        %v323 = vld [vmem:[%s322] sm:$0x3]
        %s324 = scalar_lea.vmem %s1, 8
        %v325 = vld [vmem:[%s324] sm:$0x3]
        %s326 = scalar_lea.vmem %s1, 10
        %v327 = vld [vmem:[%s326] sm:$0x3]
        %s328 = scalar_lea.vmem %s1, 12
        %v329 = vld [vmem:[%s328] sm:$0x3]
        %s330 = scalar_lea.vmem %s1, 14
        %v331 = vld [vmem:[%s330] sm:$0x3]
        %s332 = scalar_lea.vmem %s1, 16
        %v333 = vld [vmem:[%s332] sm:$0x3]
        %v334 = vld [vmem:[%s2] sm:$0xff]
        %v335 = vld [vmem:[%s2 + $0x8] sm:$0xff]
        %337 = vst [vmem:[#allocation1] ss:$2 sm:$0xff] %v304
        %v338 = vld.sshfl [vmem:[#allocation1] sm:$0xff pattern:$0x75316420]
        %v339 = vld.sshfl [vmem:[#allocation1 + $0x8] sm:$0xff pattern:$0x75316420]
        %vm340 = vcmask 31744
        %v342 = vsel %vm340, %v334, 0
        %v345 = vsel %vm340, %v335, 0
        %vm347 = vcmask 1043456
        %v348 = vsel %vm347, %v338, 0
        %v350 = vsel %vm347, %v339, 0
        %352 = vmatpush.msra.mxu0 0.0
        %353 = vmatpush.msra.mxu0 0.0
        %354 = vmatpush.msra.mxu0 0.0
        %355 = vmatpush.msra.mxu0 0.0
        %356 = vmatpush.msra.mxu0 0.0
        %357 = vmatpush.msra.mxu0 0.0
        %358 = vmatpush.msra.mxu0 0.0
        %359 = vmatpush.msra.mxu0 0.0
        %360 = vmatpush.msra.mxu0 0.0
        %361 = vmatpush.msra.mxu0 0.0
        %362 = vmatpush.msra.mxu0 0.0
        %363 = vmatpush.msra.mxu0 0.0
        %364 = vmatpush.msra.mxu0 0.0
        %365 = vmatpush.msra.mxu0 0.0
        %366 = vmatpush.msra.mxu0 0.0
        %367 = vmatpush.msra.mxu0 %v348
        %368 = vmatmul.f32.gmra.mxu0 %v342
        %v369 = vpop.f32.mrf.mxu0
        %v370 = vadd.f32 0.0, %v369
        %371 = vmatmul.f32.gmra.mxu0 %v345
        %v372 = vpop.f32.mrf.mxu0
        %v373 = vadd.f32 0.0, %v372
        %374 = vdwg.mxu0
        %375 = vmatpush.msra.mxu0 0.0
        %376 = vmatpush.msra.mxu0 0.0
        %377 = vmatpush.msra.mxu0 0.0
        %378 = vmatpush.msra.mxu0 0.0
        %379 = vmatpush.msra.mxu0 0.0
        %380 = vmatpush.msra.mxu0 0.0
        %381 = vmatpush.msra.mxu0 0.0
        %382 = vmatpush.msra.mxu0 0.0
        %383 = vmatpush.msra.mxu0 0.0
        %384 = vmatpush.msra.mxu0 0.0
        %385 = vmatpush.msra.mxu0 0.0
        %386 = vmatpush.msra.mxu0 0.0
        %387 = vmatpush.msra.mxu0 0.0
        %388 = vmatpush.msra.mxu0 0.0
        %389 = vmatpush.msra.mxu0 0.0
        %390 = vmatpush.msra.mxu0 %v350
        %391 = vmatmul.f32.gmra.mxu0 %v342
        %v392 = vpop.f32.mrf.mxu0
        %v393 = vadd.f32 0.0, %v392
        %394 = vmatmul.f32.gmra.mxu0 %v345
        %v395 = vpop.f32.mrf.mxu0
        %v396 = vadd.f32 0.0, %v395
        %397 = vdwg.mxu0
        %399 = vset.pattern.permute.xlu0 0
        %400 = vperm.xlu0 %399, %v305
        %v401 = vpop.permute.xlu0 %400
        %404 = vset.pattern.permute.xlu0 0
        %405 = vperm.xlu0 %404, %v306
        %v406 = vpop.permute.xlu0 %405
        %v408 = vmul.f32 %v370, %v401
        %v409 = vmul.f32 %v393, %v401
        %v410 = vmul.f32 %v373, %v406
        %v411 = vmul.f32 %v396, %v406
        %413 = vset.pattern.permute.xlu0 0
        %414 = vperm.xlu0 %413, %v311
        %v415 = vpop.permute.xlu0 %414
        %418 = vset.pattern.permute.xlu0 0
        %419 = vperm.xlu0 %418, %v312
        %v420 = vpop.permute.xlu0 %419
        %v422 = vadd.f32 %v408, %v415
        %v423 = vadd.f32 %v409, %v415
        %v424 = vadd.f32 %v410, %v420
        %v425 = vadd.f32 %v411, %v420
        %v426 = vmax.f32 %v422, 0.0
        %v427 = vmax.f32 %v423, 0.0
        %v428 = vmax.f32 %v424, 0.0
        %v429 = vmax.f32 %v425, 0.0
        %v430 = vld [vmem:[%s3] sm:$0xff]
        %v431 = vld [vmem:[%s3 + $0x8] sm:$0xff]
        %432 = vrot.lane.b32.xlu0 %v428, 17
        %v433 = vpop.permute.xlu0 %432
        %434 = vrot.lane.b32.xlu0 %v429, 17
        %v435 = vpop.permute.xlu0 %434
        %v436 = vlaneseq
        %v437 = vand.u32 %v436, 127
        %vm438 = vcmp.lt.s32.totalorder %v437, 17
        %v439 = vsel %vm438, %v433, %v435
        %v440 = vsel %vm438, %v435, %v433
        %v442 = vperm.slane %v317, 0
        %v443 = vperm.slane %v317, 1
        %v446 = vmul.f32 %v440, %v442
        %v447 = vmul.f32 %v439, %v443
        %448 = vrot.lane.b32.xlu0 %v428, 16
        %v449 = vpop.permute.xlu0 %448
        %450 = vrot.lane.b32.xlu0 %v429, 16
        %v451 = vpop.permute.xlu0 %450
        %vm452 = vcmp.lt.s32.totalorder %v437, 16
        %v453 = vsel %vm452, %v449, %v451
        %v454 = vsel %vm452, %v451, %v449
        %v456 = vperm.slane %v319, 0
        %v457 = vperm.slane %v319, 1
        %v460 = vmul.f32 %v454, %v456
        %v461 = vmul.f32 %v453, %v457
        %462 = vrot.lane.b32.xlu0 %v428, 15
        %v463 = vpop.permute.xlu0 %462
        %464 = vrot.lane.b32.xlu0 %v429, 15
        %v465 = vpop.permute.xlu0 %464
        %vm466 = vcmp.lt.s32.totalorder %v437, 15
        %v467 = vsel %vm466, %v463, %v465
        %v468 = vsel %vm466, %v465, %v463
        %v470 = vperm.slane %v321, 0
        %v471 = vperm.slane %v321, 1
        %v474 = vmul.f32 %v468, %v470
        %v475 = vmul.f32 %v467, %v471
        %476 = vrot.lane.b32.xlu0 %v428, 1
        %v477 = vpop.permute.xlu0 %476
        %478 = vrot.lane.b32.xlu0 %v429, 1
        %v479 = vpop.permute.xlu0 %478
        %vm480 = vcmp.lt.s32.totalorder %v437, 1
        %v481 = vsel %vm480, %v477, %v479
        %v482 = vsel %vm480, %v479, %v477
        %v484 = vperm.slane %v323, 0
        %v485 = vperm.slane %v323, 1
        %v488 = vmul.f32 %v482, %v484
        %v489 = vmul.f32 %v481, %v485
        %v491 = vperm.slane %v325, 0
        %v492 = vperm.slane %v325, 1
        %v495 = vmul.f32 %v428, %v491
        %v496 = vmul.f32 %v429, %v492
        %497 = vrot.lane.b32.xlu0 %v428, 127
        %v498 = vpop.permute.xlu0 %497
        %499 = vrot.lane.b32.xlu0 %v429, 127
        %v500 = vpop.permute.xlu0 %499
        %vm501 = vcmp.lt.s32.totalorder %v437, 127
        %v502 = vsel %vm501, %v498, %v500
        %v503 = vsel %vm501, %v500, %v498
        %v505 = vperm.slane %v327, 0
        %v506 = vperm.slane %v327, 1
        %v509 = vmul.f32 %v502, %v505
        %v510 = vmul.f32 %v503, %v506
        %511 = vrot.lane.b32.xlu0 %v428, 113
        %v512 = vpop.permute.xlu0 %511
        %513 = vrot.lane.b32.xlu0 %v429, 113
        %v514 = vpop.permute.xlu0 %513
        %vm515 = vcmp.lt.s32.totalorder %v437, 113
        %v516 = vsel %vm515, %v512, %v514
        %v517 = vsel %vm515, %v514, %v512
        %v519 = vperm.slane %v329, 0
        %v520 = vperm.slane %v329, 1
        %v523 = vmul.f32 %v516, %v519
        %v524 = vmul.f32 %v517, %v520
        %525 = vrot.lane.b32.xlu0 %v428, 112
        %v526 = vpop.permute.xlu0 %525
        %527 = vrot.lane.b32.xlu0 %v429, 112
        %v528 = vpop.permute.xlu0 %527
        %vm529 = vcmp.lt.s32.totalorder %v437, 112
        %v530 = vsel %vm529, %v526, %v528
        %v531 = vsel %vm529, %v528, %v526
        %v533 = vperm.slane %v331, 0
        %v534 = vperm.slane %v331, 1
        %v537 = vmul.f32 %v530, %v533
        %v538 = vmul.f32 %v531, %v534
        %539 = vrot.lane.b32.xlu0 %v428, 111
        %v540 = vpop.permute.xlu0 %539
        %541 = vrot.lane.b32.xlu0 %v429, 111
        %v542 = vpop.permute.xlu0 %541
        %vm543 = vcmp.lt.s32.totalorder %v437, 111
        %v544 = vsel %vm543, %v540, %v542
        %v545 = vsel %vm543, %v542, %v540
        %v547 = vperm.slane %v333, 0
        %v548 = vperm.slane %v333, 1
        %v551 = vmul.f32 %v544, %v547
        %v552 = vmul.f32 %v545, %v548
        %vm553 = vcmask 588800
        %v555 = vsel %vm553, %v430, 0
        %v558 = vsel %vm553, %v431, 0
        %560 = vmatpush.msra.mxu0 0.0
        %561 = vmatpush.msra.mxu0 0.0
        %562 = vmatpush.msra.mxu0 0.0
        %563 = vmatpush.msra.mxu0 0.0
        %564 = vmatpush.msra.mxu0 0.0
        %565 = vmatpush.msra.mxu0 0.0
        %566 = vmatpush.msra.mxu0 0.0
        %567 = vmatpush.msra.mxu0 %v551
        %568 = vmatpush.msra.mxu0 %v537
        %569 = vmatpush.msra.mxu0 %v523
        %570 = vmatpush.msra.mxu0 %v509
        %571 = vmatpush.msra.mxu0 %v495
        %572 = vmatpush.msra.mxu0 %v488
        %573 = vmatpush.msra.mxu0 %v474
        %574 = vmatpush.msra.mxu0 %v460
        %575 = vmatpush.msra.mxu0 %v446
        %576 = vmatmul.f32.gmra.mxu0 %v555
        %v577 = vpop.f32.mrf.mxu0
        %v578 = vadd.f32 0.0, %v577
        %579 = vmatmul.f32.gmra.mxu0 %v558
        %v580 = vpop.f32.mrf.mxu0
        %v581 = vadd.f32 0.0, %v580
        %582 = vdwg.mxu0
        %583 = vmatpush.msra.mxu0 0.0
        %584 = vmatpush.msra.mxu0 0.0
        %585 = vmatpush.msra.mxu0 0.0
        %586 = vmatpush.msra.mxu0 0.0
        %587 = vmatpush.msra.mxu0 0.0
        %588 = vmatpush.msra.mxu0 0.0
        %589 = vmatpush.msra.mxu0 0.0
        %590 = vmatpush.msra.mxu0 %v552
        %591 = vmatpush.msra.mxu0 %v538
        %592 = vmatpush.msra.mxu0 %v524
        %593 = vmatpush.msra.mxu0 %v510
        %594 = vmatpush.msra.mxu0 %v496
        %595 = vmatpush.msra.mxu0 %v489
        %596 = vmatpush.msra.mxu0 %v475
        %597 = vmatpush.msra.mxu0 %v461
        %598 = vmatpush.msra.mxu0 %v447
        %599 = vmatmul.f32.gmra.mxu0 %v555
        %v600 = vpop.f32.mrf.mxu0
        %v601 = vadd.f32 0.0, %v600
        %602 = vmatmul.f32.gmra.mxu0 %v558
        %v603 = vpop.f32.mrf.mxu0
        %v604 = vadd.f32 0.0, %v603
        %605 = vdwg.mxu0
        %607 = vset.pattern.permute.xlu0 0
        %608 = vperm.xlu0 %607, %v307
        %v609 = vpop.permute.xlu0 %608
        %612 = vset.pattern.permute.xlu0 0
        %613 = vperm.xlu0 %612, %v308
        %v614 = vpop.permute.xlu0 %613
        %v616 = vmul.f32 %v578, %v609
        %v617 = vmul.f32 %v601, %v609
        %v618 = vmul.f32 %v581, %v614
        %v619 = vmul.f32 %v604, %v614
        %621 = vset.pattern.permute.xlu0 0
        %622 = vperm.xlu0 %621, %v313
        %v623 = vpop.permute.xlu0 %622
        %626 = vset.pattern.permute.xlu0 0
        %627 = vperm.xlu0 %626, %v314
        %v628 = vpop.permute.xlu0 %627
        %v630 = vadd.f32 %v616, %v623
        %v631 = vadd.f32 %v617, %v623
        %v632 = vadd.f32 %v618, %v628
        %v633 = vadd.f32 %v619, %v628
        %v634 = vmax.f32 %v630, 0.0
        %v635 = vmax.f32 %v631, 0.0
        %v636 = vmax.f32 %v632, 0.0
        %v637 = vmax.f32 %v633, 0.0
        %v638 = vld [vmem:[%s4] sm:$0xff]
        %639 = vrot.lane.b32.xlu0 %v636, 17
        %v640 = vpop.permute.xlu0 %639
        %641 = vrot.lane.b32.xlu0 %v637, 17
        %v642 = vpop.permute.xlu0 %641
        %v643 = vsel %vm438, %v640, %v642
        %v644 = vsel %vm438, %v642, %v640
        %v645 = vmul.f32 %v644, %v442
        %v646 = vmul.f32 %v643, %v443
        %647 = vrot.lane.b32.xlu0 %v636, 16
        %v648 = vpop.permute.xlu0 %647
        %649 = vrot.lane.b32.xlu0 %v637, 16
        %v650 = vpop.permute.xlu0 %649
        %v651 = vsel %vm452, %v648, %v650
        %v652 = vsel %vm452, %v650, %v648
        %v653 = vmul.f32 %v652, %v456
        %v654 = vmul.f32 %v651, %v457
        %655 = vrot.lane.b32.xlu0 %v636, 15
        %v656 = vpop.permute.xlu0 %655
        %657 = vrot.lane.b32.xlu0 %v637, 15
        %v658 = vpop.permute.xlu0 %657
        %v659 = vsel %vm466, %v656, %v658
        %v660 = vsel %vm466, %v658, %v656
        %v661 = vmul.f32 %v660, %v470
        %v662 = vmul.f32 %v659, %v471
        %663 = vrot.lane.b32.xlu0 %v636, 1
        %v664 = vpop.permute.xlu0 %663
        %665 = vrot.lane.b32.xlu0 %v637, 1
        %v666 = vpop.permute.xlu0 %665
        %v667 = vsel %vm480, %v664, %v666
        %v668 = vsel %vm480, %v666, %v664
        %v669 = vmul.f32 %v668, %v484
        %v670 = vmul.f32 %v667, %v485
        %v671 = vmul.f32 %v636, %v491
        %v672 = vmul.f32 %v637, %v492
        %673 = vrot.lane.b32.xlu0 %v636, 127
        %v674 = vpop.permute.xlu0 %673
        %675 = vrot.lane.b32.xlu0 %v637, 127
        %v676 = vpop.permute.xlu0 %675
        %v677 = vsel %vm501, %v674, %v676
        %v678 = vsel %vm501, %v676, %v674
        %v679 = vmul.f32 %v677, %v505
        %v680 = vmul.f32 %v678, %v506
        %681 = vrot.lane.b32.xlu0 %v636, 113
        %v682 = vpop.permute.xlu0 %681
        %683 = vrot.lane.b32.xlu0 %v637, 113
        %v684 = vpop.permute.xlu0 %683
        %v685 = vsel %vm515, %v682, %v684
        %v686 = vsel %vm515, %v684, %v682
        %v687 = vmul.f32 %v685, %v519
        %v688 = vmul.f32 %v686, %v520
        %689 = vrot.lane.b32.xlu0 %v636, 112
        %v690 = vpop.permute.xlu0 %689
        %691 = vrot.lane.b32.xlu0 %v637, 112
        %v692 = vpop.permute.xlu0 %691
        %v693 = vsel %vm529, %v690, %v692
        %v694 = vsel %vm529, %v692, %v690
        %v695 = vmul.f32 %v693, %v533
        %v696 = vmul.f32 %v694, %v534
        %697 = vrot.lane.b32.xlu0 %v636, 111
        %v698 = vpop.permute.xlu0 %697
        %699 = vrot.lane.b32.xlu0 %v637, 111
        %v700 = vpop.permute.xlu0 %699
        %v701 = vsel %vm543, %v698, %v700
        %v702 = vsel %vm543, %v700, %v698
        %v703 = vmul.f32 %v701, %v547
        %v704 = vmul.f32 %v702, %v548
        %v706 = vsel %vm553, %v638, 0
        %708 = vmatpush.msra.mxu0 0.0
        %709 = vmatpush.msra.mxu0 0.0
        %710 = vmatpush.msra.mxu0 0.0
        %711 = vmatpush.msra.mxu0 0.0
        %712 = vmatpush.msra.mxu0 0.0
        %713 = vmatpush.msra.mxu0 0.0
        %714 = vmatpush.msra.mxu0 0.0
        %715 = vmatpush.msra.mxu0 %v703
        %716 = vmatpush.msra.mxu0 %v695
        %717 = vmatpush.msra.mxu0 %v687
        %718 = vmatpush.msra.mxu0 %v679
        %719 = vmatpush.msra.mxu0 %v671
        %720 = vmatpush.msra.mxu0 %v669
        %721 = vmatpush.msra.mxu0 %v661
        %722 = vmatpush.msra.mxu0 %v653
        %723 = vmatpush.msra.mxu0 %v645
        %724 = vmatmul.f32.gmra.mxu0 %v706
        %v725 = vpop.f32.mrf.mxu0
        %v726 = vadd.f32 0.0, %v725
        %727 = vdwg.mxu0
        %728 = vmatpush.msra.mxu0 0.0
        %729 = vmatpush.msra.mxu0 0.0
        %730 = vmatpush.msra.mxu0 0.0
        %731 = vmatpush.msra.mxu0 0.0
        %732 = vmatpush.msra.mxu0 0.0
        %733 = vmatpush.msra.mxu0 0.0
        %734 = vmatpush.msra.mxu0 0.0
        %735 = vmatpush.msra.mxu0 %v704
        %736 = vmatpush.msra.mxu0 %v696
        %737 = vmatpush.msra.mxu0 %v688
        %738 = vmatpush.msra.mxu0 %v680
        %739 = vmatpush.msra.mxu0 %v672
        %740 = vmatpush.msra.mxu0 %v670
        %741 = vmatpush.msra.mxu0 %v662
        %742 = vmatpush.msra.mxu0 %v654
        %743 = vmatpush.msra.mxu0 %v646
        %744 = vmatmul.f32.gmra.mxu0 %v706
        %v745 = vpop.f32.mrf.mxu0
        %v746 = vadd.f32 0.0, %v745
        %747 = vdwg.mxu0
        %749 = vset.pattern.permute.xlu0 0
        %750 = vperm.xlu0 %749, %v309
        %v751 = vpop.permute.xlu0 %750
        %v753 = vmul.f32 %v726, %v751
        %v754 = vmul.f32 %v746, %v751
        %756 = vset.pattern.permute.xlu0 0
        %757 = vperm.xlu0 %756, %v315
        %v758 = vpop.permute.xlu0 %757
        %v760 = vadd.f32 %v753, %v758
        %v761 = vadd.f32 %v754, %v758
        %v762 = vmax.f32 %v760, 0.0
        %v763 = vmax.f32 %v761, 0.0
        %vm764 = vcmp.gt.f32.partialorder %v317, 0.5
        %765 = vst [vmem:[#allocation1] ss:$2 sm:$0xff] %v304
        %v766 = vld.sshfl [vmem:[#allocation1] sm:$0xff pattern:$0x75316420]
        %v767 = vld.sshfl [vmem:[#allocation1 + $0x8] sm:$0xff pattern:$0x75316420]
        %770 = vrot.lane.b32.xlu0 %v766, 17
        %v771 = vpop.permute.xlu0 %770
        %772 = vrot.lane.b32.xlu0 %v767, 17
        %v773 = vpop.permute.xlu0 %772
        %v774 = vsel %vm438, %v771, %v773
        %v775 = vsel %vm438, %v773, %v771
        %v776 = vsel %vm764, 1, 0
        %v777 = vperm.slane %v776, 0
        %v778 = vperm.slane %v776, 1
        %vm779 = vcmp.eq.s32.totalorder %v777, 1
        %vm780 = vcmp.eq.s32.totalorder %v778, 1
        %v781 = vsel %vm779, %v775, -3e+38
        %v782 = vsel %vm780, %v774, -3e+38
        %v785 = vrot.slane %v782, 4
        %v786 = vsel %vm347, %v781, %v785
        %v788 = vmax.f32 %v304, %v786
        %vm789 = vcmp.gt.f32.partialorder %v319, 0.5
        %790 = vst [vmem:[#allocation1] ss:$2 sm:$0xff] %v304
        %v791 = vld.sshfl [vmem:[#allocation1] sm:$0xff pattern:$0x75316420]
        %v792 = vld.sshfl [vmem:[#allocation1 + $0x8] sm:$0xff pattern:$0x75316420]
        %795 = vrot.lane.b32.xlu0 %v791, 16
        %v796 = vpop.permute.xlu0 %795
        %797 = vrot.lane.b32.xlu0 %v792, 16
        %v798 = vpop.permute.xlu0 %797
        %v799 = vsel %vm452, %v796, %v798
        %v800 = vsel %vm452, %v798, %v796
        %v801 = vsel %vm789, 1, 0
        %v802 = vperm.slane %v801, 0
        %v803 = vperm.slane %v801, 1
        %vm804 = vcmp.eq.s32.totalorder %v802, 1
        %vm805 = vcmp.eq.s32.totalorder %v803, 1
        %v806 = vsel %vm804, %v800, -3e+38
        %v807 = vsel %vm805, %v799, -3e+38
        %v810 = vrot.slane %v807, 4
        %v811 = vsel %vm347, %v806, %v810
        %v813 = vmax.f32 %v788, %v811
        %vm814 = vcmp.gt.f32.partialorder %v321, 0.5
        %815 = vst [vmem:[#allocation1] ss:$2 sm:$0xff] %v304
        %v816 = vld.sshfl [vmem:[#allocation1] sm:$0xff pattern:$0x75316420]
        %v817 = vld.sshfl [vmem:[#allocation1 + $0x8] sm:$0xff pattern:$0x75316420]
        %820 = vrot.lane.b32.xlu0 %v816, 15
        %v821 = vpop.permute.xlu0 %820
        %822 = vrot.lane.b32.xlu0 %v817, 15
        %v823 = vpop.permute.xlu0 %822
        %v824 = vsel %vm466, %v821, %v823
        %v825 = vsel %vm466, %v823, %v821
        %v826 = vsel %vm814, 1, 0
        %v827 = vperm.slane %v826, 0
        %v828 = vperm.slane %v826, 1
        %vm829 = vcmp.eq.s32.totalorder %v827, 1
        %vm830 = vcmp.eq.s32.totalorder %v828, 1
        %v831 = vsel %vm829, %v825, -3e+38
        %v832 = vsel %vm830, %v824, -3e+38
        %v835 = vrot.slane %v832, 4
        %v836 = vsel %vm347, %v831, %v835
        %v838 = vmax.f32 %v813, %v836
        %vm839 = vcmp.gt.f32.partialorder %v323, 0.5
        %840 = vst [vmem:[#allocation1] ss:$2 sm:$0xff] %v304
        %v841 = vld.sshfl [vmem:[#allocation1] sm:$0xff pattern:$0x75316420]
        %v842 = vld.sshfl [vmem:[#allocation1 + $0x8] sm:$0xff pattern:$0x75316420]
        %845 = vrot.lane.b32.xlu0 %v841, 1
        %v846 = vpop.permute.xlu0 %845
        %847 = vrot.lane.b32.xlu0 %v842, 1
        %v848 = vpop.permute.xlu0 %847
        %v849 = vsel %vm480, %v846, %v848
        %v850 = vsel %vm480, %v848, %v846
        %v851 = vsel %vm839, 1, 0
        %v852 = vperm.slane %v851, 0
        %v853 = vperm.slane %v851, 1
        %vm854 = vcmp.eq.s32.totalorder %v852, 1
        %vm855 = vcmp.eq.s32.totalorder %v853, 1
        %v856 = vsel %vm854, %v850, -3e+38
        %v857 = vsel %vm855, %v849, -3e+38
        %v860 = vrot.slane %v857, 4
        %v861 = vsel %vm347, %v856, %v860
        %v863 = vmax.f32 %v838, %v861
        %vm864 = vcmp.gt.f32.partialorder %v327, 0.5
        %865 = vst [vmem:[#allocation1] ss:$2 sm:$0xff] %v304
        %v866 = vld.sshfl [vmem:[#allocation1] sm:$0xff pattern:$0x75316420]
        %v867 = vld.sshfl [vmem:[#allocation1 + $0x8] sm:$0xff pattern:$0x75316420]
        %870 = vrot.lane.b32.xlu0 %v866, 127
        %v871 = vpop.permute.xlu0 %870
        %872 = vrot.lane.b32.xlu0 %v867, 127
        %v873 = vpop.permute.xlu0 %872
        %v874 = vsel %vm501, %v871, %v873
        %v875 = vsel %vm501, %v873, %v871
        %v876 = vsel %vm864, 1, 0
        %v877 = vperm.slane %v876, 0
        %v878 = vperm.slane %v876, 1
        %vm879 = vcmp.eq.s32.totalorder %v877, 1
        %vm880 = vcmp.eq.s32.totalorder %v878, 1
        %v881 = vsel %vm879, %v874, -3e+38
        %v882 = vsel %vm880, %v875, -3e+38
        %v885 = vrot.slane %v882, 4
        %v886 = vsel %vm347, %v881, %v885
        %v888 = vmax.f32 %v863, %v886
        %vm889 = vcmp.gt.f32.partialorder %v329, 0.5
        %890 = vst [vmem:[#allocation1] ss:$2 sm:$0xff] %v304
        %v891 = vld.sshfl [vmem:[#allocation1] sm:$0xff pattern:$0x75316420]
        %v892 = vld.sshfl [vmem:[#allocation1 + $0x8] sm:$0xff pattern:$0x75316420]
        %895 = vrot.lane.b32.xlu0 %v891, 113
        %v896 = vpop.permute.xlu0 %895
        %897 = vrot.lane.b32.xlu0 %v892, 113
        %v898 = vpop.permute.xlu0 %897
        %v899 = vsel %vm515, %v896, %v898
        %v900 = vsel %vm515, %v898, %v896
        %v901 = vsel %vm889, 1, 0
        %v902 = vperm.slane %v901, 0
        %v903 = vperm.slane %v901, 1
        %vm904 = vcmp.eq.s32.totalorder %v902, 1
        %vm905 = vcmp.eq.s32.totalorder %v903, 1
        %v906 = vsel %vm904, %v899, -3e+38
        %v907 = vsel %vm905, %v900, -3e+38
        %v910 = vrot.slane %v907, 4
        %v911 = vsel %vm347, %v906, %v910
        %v913 = vmax.f32 %v888, %v911
        %vm914 = vcmp.gt.f32.partialorder %v331, 0.5
        %915 = vst [vmem:[#allocation1] ss:$2 sm:$0xff] %v304
        %v916 = vld.sshfl [vmem:[#allocation1] sm:$0xff pattern:$0x75316420]
        %v917 = vld.sshfl [vmem:[#allocation1 + $0x8] sm:$0xff pattern:$0x75316420]
        %920 = vrot.lane.b32.xlu0 %v916, 112
        %v921 = vpop.permute.xlu0 %920
        %922 = vrot.lane.b32.xlu0 %v917, 112
        %v923 = vpop.permute.xlu0 %922
        %v924 = vsel %vm529, %v921, %v923
        %v925 = vsel %vm529, %v923, %v921
        %v926 = vsel %vm914, 1, 0
        %v927 = vperm.slane %v926, 0
        %v928 = vperm.slane %v926, 1
        %vm929 = vcmp.eq.s32.totalorder %v927, 1
        %vm930 = vcmp.eq.s32.totalorder %v928, 1
        %v931 = vsel %vm929, %v924, -3e+38
        %v932 = vsel %vm930, %v925, -3e+38
        %v935 = vrot.slane %v932, 4
        %v936 = vsel %vm347, %v931, %v935
        %v938 = vmax.f32 %v913, %v936
        %vm939 = vcmp.gt.f32.partialorder %v333, 0.5
        %940 = vst [vmem:[#allocation1] ss:$2 sm:$0xff] %v304
        %v941 = vld.sshfl [vmem:[#allocation1] sm:$0xff pattern:$0x75316420]
        %v942 = vld.sshfl [vmem:[#allocation1 + $0x8] sm:$0xff pattern:$0x75316420]
        %945 = vrot.lane.b32.xlu0 %v941, 111
        %v946 = vpop.permute.xlu0 %945
        %947 = vrot.lane.b32.xlu0 %v942, 111
        %v948 = vpop.permute.xlu0 %947
        %v949 = vsel %vm543, %v946, %v948
        %v950 = vsel %vm543, %v948, %v946
        %v951 = vsel %vm939, 1, 0
        %v952 = vperm.slane %v951, 0
        %v953 = vperm.slane %v951, 1
        %vm954 = vcmp.eq.s32.totalorder %v952, 1
        %vm955 = vcmp.eq.s32.totalorder %v953, 1
        %v956 = vsel %vm954, %v949, -3e+38
        %v957 = vsel %vm955, %v950, -3e+38
        %v960 = vrot.slane %v957, 4
        %v961 = vsel %vm347, %v956, %v960
        %v963 = vmax.f32 %v938, %v961
        %v964 = vld [vmem:[%s5] sm:$0xff]
        %966 = vst [vmem:[#allocation1] ss:$2 sm:$0xff] %v963
        %v967 = vld.sshfl [vmem:[#allocation1] sm:$0xff pattern:$0x75316420]
        %v968 = vld.sshfl [vmem:[#allocation1 + $0x8] sm:$0xff pattern:$0x75316420]
        %v970 = vsel %vm340, %v964, 0
        %v972 = vsel %vm347, %v967, 0
        %v974 = vsel %vm347, %v968, 0
        %976 = vmatpush.msra.mxu0 0.0
        %977 = vmatpush.msra.mxu0 0.0
        %978 = vmatpush.msra.mxu0 0.0
        %979 = vmatpush.msra.mxu0 0.0
        %980 = vmatpush.msra.mxu0 0.0
        %981 = vmatpush.msra.mxu0 0.0
        %982 = vmatpush.msra.mxu0 0.0
        %983 = vmatpush.msra.mxu0 0.0
        %984 = vmatpush.msra.mxu0 0.0
        %985 = vmatpush.msra.mxu0 0.0
        %986 = vmatpush.msra.mxu0 0.0
        %987 = vmatpush.msra.mxu0 0.0
        %988 = vmatpush.msra.mxu0 0.0
        %989 = vmatpush.msra.mxu0 0.0
        %990 = vmatpush.msra.mxu0 0.0
        %991 = vmatpush.msra.mxu0 %v972
        %992 = vmatmul.f32.gmra.mxu0 %v970
        %v993 = vpop.f32.mrf.mxu0
        %v994 = vadd.f32 0.0, %v993
        %995 = vdwg.mxu0
        %996 = vmatpush.msra.mxu0 0.0
        %997 = vmatpush.msra.mxu0 0.0
        %998 = vmatpush.msra.mxu0 0.0
        %999 = vmatpush.msra.mxu0 0.0
        %1000 = vmatpush.msra.mxu0 0.0
        %1001 = vmatpush.msra.mxu0 0.0
        %1002 = vmatpush.msra.mxu0 0.0
        %1003 = vmatpush.msra.mxu0 0.0
        %1004 = vmatpush.msra.mxu0 0.0
        %1005 = vmatpush.msra.mxu0 0.0
        %1006 = vmatpush.msra.mxu0 0.0
        %1007 = vmatpush.msra.mxu0 0.0
        %1008 = vmatpush.msra.mxu0 0.0
        %1009 = vmatpush.msra.mxu0 0.0
        %1010 = vmatpush.msra.mxu0 0.0
        %1011 = vmatpush.msra.mxu0 %v974
        %1012 = vmatmul.f32.gmra.mxu0 %v970
        %v1013 = vpop.f32.mrf.mxu0
        %v1014 = vadd.f32 0.0, %v1013
        %1015 = vdwg.mxu0
        %1017 = vset.pattern.permute.xlu0 0
        %1018 = vperm.xlu0 %1017, %v310
        %v1019 = vpop.permute.xlu0 %1018
        %v1021 = vmul.f32 %v994, %v1019
        %v1022 = vmul.f32 %v1014, %v1019
        %1024 = vset.pattern.permute.xlu0 0
        %1025 = vperm.xlu0 %1024, %v316
        %v1026 = vpop.permute.xlu0 %1025
        %v1028 = vadd.f32 %v1021, %v1026
        %v1029 = vadd.f32 %v1022, %v1026
        %v1030 = vmax.f32 %v1028, 0.0
        %v1031 = vmax.f32 %v1029, 0.0
        %1032 = vst [vmem:[%s298] sm:$0xff] %v426
        %1033 = vst [vmem:[%s298 + $0x8] sm:$0xff] %v427
        %1034 = vst [vmem:[%s298 + $0x10] sm:$0xff] %v634
        %1035 = vst [vmem:[%s298 + $0x18] sm:$0xff] %v635
        %1036 = vst [vmem:[%s298 + $0x20] sm:$0xff] %v762
        %1037 = vst [vmem:[%s298 + $0x28] sm:$0xff] %v763
        %1038 = vst [vmem:[%s298 + $0x30] sm:$0xff] %v1030
        %1039 = vst [vmem:[%s298 + $0x38] sm:$0xff] %v1031
        %s1040 = sand.u32 %s203, 1
        %s1041 = scalar_lea.sflag [#allocation3], %s1040
        %s1042 = sand.u32 %s203, 1
        %s1043 = smul.addr %s1042, 64
        %s1044 = scalar_lea.vmem [#allocation2], %s1043
        // Predicated region
        $region53: #{tpu_custom_call.1} parent=51 // pred_check
          %p1045 = pneg %p213
        $region54: #{tpu_custom_call.1} parent=51 // pred_check_branch
          %1047 = sbr.rel (%p1045) target = $region56
        $region55: #{tpu_custom_call.1} parent=51 // pred_region
          %1049 = vsyncadd %s1041, 0
          %s1050 = smul.addr %s22, 8
          %s1051 = smul.addr %s1050, 8
          %s1052 = scalar_lea.hbm %s8, %s1051
          %s1053 = sshll.u32 %s1044, 4
          %s1054 = int_to_ptr.vmem [resolvable:$true] %s1053
          %s1055 = sshll.u32 %s1052, 4
          %s1056 = int_to_ptr.hbm [resolvable:$true] %s1055
          %1061 = dma.vmem_to_hbm [thread:$0]  %s1054, 1024, %s1056, %s1041, 256, 256, 16
        $region56: #{tpu_custom_call.1} parent=51 // pred_fallthru
          _
      $region52: #{tpu_custom_call.1} parent=5 // pred_fallthru
        _
      %p1062 = scmp.le.s32.totalorder 2, %s17
      // Predicated region
      $region57: #{tpu_custom_call.1} parent=5 // pred_check
        %p1063 = pneg %p1062
      $region58: #{tpu_custom_call.1} parent=5 // pred_check_branch
        %1065 = sbr.rel (%p1063) target = $region60
      $region59: #{tpu_custom_call.1} parent=5 // pred_region
        %s1066 = ssub.s32 %s17, 2
        // Predicated region
        $region61: #{tpu_custom_call.1} parent=59 // pred_check
          %p1067 = pneg %p219
        $region62: #{tpu_custom_call.1} parent=59 // pred_check_branch
          %1069 = sbr.rel (%p1067) target = $region64
        $region63: #{tpu_custom_call.1} parent=59 // pred_region
          %s1070 = sand.u32 %s204, 1
          %s1071 = scalar_lea.sflag [#allocation3], %s1070
          %s1072 = sand.u32 %s204, 1
          %s1073 = smul.addr %s1072, 64
          %s1074 = scalar_lea.vmem [#allocation2], %s1073
          %1076 = dma.done %s1071, 1024
        $region64: #{tpu_custom_call.1} parent=59 // pred_fallthru
          _
      $region60: #{tpu_custom_call.1} parent=5 // pred_fallthru
        _
    $region6: #{tpu_custom_call.1} parent=1 // loop_footer
      %s21 = sadd.s32 1, %s17
    $region7: #{tpu_custom_call.1} parent=1 // loop_footer_branch
      %16 = sbr.rel target = $region3
    $region8: #{tpu_custom_call.1} parent=1 // loop_exit
      _
    %1077 = vsyncpa [#allocation3], 1
    %s1078 = scalar_lea.sflag [#allocation3], 1
    %1079 = vsyncpa %s1078, 1

</llo_original>
